<compile_context>
chip_gen: v6e
topology: v6e:2x2x1
jax: 0.10.0
libtpu: 0.0.40
codegen_flags: <defaults>
</compile_context>

<pallas_src>
import functools

import jax
import jax.numpy as jnp
from jax import lax
from jax.experimental import pallas as pl
from jax.experimental.pallas import tpu as pltpu

IGNORE_INDEX = -100


def _linear_ce_kernel(t_ref, h_ref, w_ref, loss_ref, m_sc, l_sc, tgt_sc, *,
                      vocab_size, tv, ignore_index, mask_vocab_tail):
    """Grid = (token_tiles, vocab_tiles); the vocab axis is the (arbitrary) reduction.

    Per token tile, streams vocab tiles keeping a running max / sum-exp and the
    gathered target logit (all lane-dense, shape [1, TT]), then emits the
    per-token CE loss (0 for ignored / padded tokens).
    """
    j = pl.program_id(1)

    @pl.when(j == 0)
    def _():
        m_sc[...] = jnp.full_like(m_sc, -jnp.inf)
        l_sc[...] = jnp.zeros_like(l_sc)
        tgt_sc[...] = jnp.zeros_like(tgt_sc)

    # logits[v, t] = sum_d w[v, d] * h[t, d]  -> [TV, TT]; bf16 x bf16 -> f32 on MXU.
    logits = lax.dot_general(w_ref[...], h_ref[...],
                             (((1,), (1,)), ((), ())),
                             preferred_element_type=jnp.float32)

    # Vocab row index of each logit (needed for the target gather regardless).
    row = j * tv + lax.broadcasted_iota(jnp.int32, logits.shape, 0)

    if mask_vocab_tail:
        # Only emitted when tv does not divide V: the partial last weight block
        # holds garbage rows which must not contribute to max/sum-exp.
        logits = jnp.where(row < vocab_size, logits, -jnp.inf)

    tgt = t_ref[...]                                   # [1, TT] int32
    hit = row == tgt                                   # broadcast over sublanes
    tgt_sc[...] += jnp.sum(jnp.where(hit, logits, 0.0), axis=0, keepdims=True)

    # Online log-sum-exp over the vocab (sublane) axis.
    m_prev = m_sc[...]
    m_new = jnp.maximum(m_prev, jnp.max(logits, axis=0, keepdims=True))
    l_sc[...] = (jnp.exp(m_prev - m_new) * l_sc[...]
                 + jnp.sum(jnp.exp(logits - m_new), axis=0, keepdims=True))
    m_sc[...] = m_new

    @pl.when(j == pl.num_programs(1) - 1)
    def _():
        lse = m_sc[...] + jnp.log(l_sc[...])
        valid = tgt != ignore_index
        loss_ref[...] = jnp.where(valid, lse - tgt_sc[...], 0.0).astype(loss_ref.dtype)


def linear_cross_entropy_loss(weight, outputs, targets, *,
                              ignore_index=IGNORE_INDEX,
                              tt=512, tv=512,
                              compute_dtype=jnp.bfloat16):
    """weight: [V, D], outputs: [B, S, D], targets: [B, S] (int). Returns scalar loss.

    Numerically equivalent to the chunked torch forward (chunking there is a pure
    memory optimization): sum_over_valid_tokens(CE) / num_valid_tokens.
    """
    V, D = weight.shape
    B, S, _ = outputs.shape
    n = B * S

    # ---- tile selection -----------------------------------------------------
    # Token tile: tokens sit on the lane axis of targets/loss/accumulators, so
    # tt must be a multiple of 128.  Prefer >= 2 token tiles so the "parallel"
    # grid axis can split across both TensorCores on megacore parts (v7x).
    tt = max(128, (min(tt, pl.cdiv(n, 128) * 128) // 128) * 128)
    while tt > 128 and pl.cdiv(n, tt) < 2:
        tt //= 2
    n_tiles = pl.cdiv(n, tt)
    n_pad = n_tiles * tt

    # Vocab tile: sublane axis -> multiple of 8 suffices; prefer multiples of
    # 128 for the MXU, but never exceed the (unpadded) vocab size.
    tv = min(tv, V)
    tv = max(8, (tv // 128) * 128) if tv >= 128 else max(8, (tv // 8) * 8)
    v_tiles = pl.cdiv(V, tv)
    mask_vocab_tail = (V % tv) != 0

    # ---- operand prep (NO weight padding / copy) ----------------------------
    w = weight.astype(compute_dtype)                       # no-op if already bf16
    hidden = outputs.reshape(n, D).astype(compute_dtype)
    hidden_p = jnp.pad(hidden, ((0, n_pad - n), (0, 0)))   # fused with the cast, cheap
    tgt = targets.reshape(n).astype(jnp.int32)
    tgt_p = jnp.pad(tgt, (0, n_pad - n),
                    constant_values=ignore_index).reshape(1, n_pad)

    grid = (n_tiles, v_tiles)
    kernel = functools.partial(_linear_ce_kernel,
                               vocab_size=V, tv=tv,
                               ignore_index=ignore_index,
                               mask_vocab_tail=mask_vocab_tail)

    itemsize = jnp.dtype(compute_dtype).itemsize
    cost = pl.CostEstimate(
        flops=int(2 * n * V * D),
        transcendentals=int(n * V),
        bytes_accessed=int(n_tiles * V * D * itemsize    # weight re-streamed per token tile
                           + n_pad * D * itemsize        # hidden
                           + n_pad * 4 + n_pad * 4))     # targets + loss

    per_tok_loss = pl.pallas_call(
        kernel,
        out_shape=jax.ShapeDtypeStruct((1, n_pad), jnp.float32),
        grid_spec=pltpu.PrefetchScalarGridSpec(
            num_scalar_prefetch=0,
            grid=grid,
            in_specs=[
                pl.BlockSpec((1, tt), lambda i, j: (0, i)),   # targets (lane-dense)
                pl.BlockSpec((tt, D), lambda i, j: (i, 0)),   # hidden tokens tile
                # TODO(synk): bump to pipeline_mode=pl.Buffered(3) if the weight DMA
                # is still exposed and VMEM headroom allows (check 64 MiB on v7x).
                pl.BlockSpec((tv, D), lambda i, j: (j, 0)),   # weight vocab tile
            ],
            out_specs=pl.BlockSpec((1, tt), lambda i, j: (0, i)),
            scratch_shapes=[pltpu.VMEM((1, tt), jnp.float32)] * 3,  # m, l, tgt_logit
        ),
        compiler_params=pltpu.CompilerParams(
            dimension_semantics=("parallel", "arbitrary"),
            vmem_limit_bytes=64 * 1024 * 1024),
        cost_estimate=cost,
    )(tgt_p, hidden_p, w)

    total_elements = jnp.sum(targets != ignore_index)
    return jnp.sum(per_tok_loss) / total_elements.astype(jnp.float32)


def _reference_loss(weight, outputs, targets, ignore_index=IGNORE_INDEX):
    """Pure-JAX f32 reference matching F.linear + F.cross_entropy(sum) / mask.sum()."""
    logits = jnp.einsum('bsd,vd->bsv', outputs, weight).astype(jnp.float32)
    lse = jax.scipy.special.logsumexp(logits, axis=-1)
    safe_tgt = jnp.clip(targets, 0, weight.shape[0] - 1)
    tgt_logit = jnp.take_along_axis(logits, safe_tgt[..., None], axis=-1)[..., 0]
    mask = targets != ignore_index
    return jnp.sum(jnp.where(mask, lse - tgt_logit, 0.0)) / jnp.sum(mask)


if __name__ == "__main__":
    key = jax.random.PRNGKey(0)
    k_w, k_h, k_t, k_m = jax.random.split(key, 4)

    B, S, D, V = 2, 16, 128, 1000   # small synthetic shapes

    weight = jax.random.normal(k_w, (V, D), dtype=jnp.float32) * 0.02
    outputs = jax.random.normal(k_h, (B, S, D), dtype=jnp.float32)
    targets = jax.random.randint(k_t, (B, S), 0, V, dtype=jnp.int32)
    # Mark some tokens as ignored (like padding labels in SFT).
    ignore_mask = jax.random.bernoulli(k_m, 0.25, (B, S))
    targets = jnp.where(ignore_mask, IGNORE_INDEX, targets)

    loss = jax.jit(linear_cross_entropy_loss)(weight, outputs, targets)
    loss = jax.block_until_ready(loss)

    ref = jax.block_until_ready(_reference_loss(weight, outputs, targets))
    assert jnp.isfinite(loss), "kernel produced non-finite loss"
    # bf16 matmul inputs vs f32 reference -> loosened tolerance (matches bf16 training numerics).
    assert jnp.allclose(loss, ref, rtol=1e-2, atol=1e-2), (loss, ref)

    print("KERNEL_OK")
</pallas_src>

<mosaic_0001>
module attributes {stable_mosaic.version = 11 : i64} {
  func.func @_linear_ce_kernel(%arg0: i32, %arg1: i32, %arg2: memref<1x128xi32, #tpu.memory_space<vmem>>, %arg3: memref<128x128xbf16, #tpu.memory_space<vmem>>, %arg4: memref<512x128xbf16, #tpu.memory_space<vmem>>, %arg5: memref<1x128xf32, #tpu.memory_space<vmem>>, %arg6: memref<1x128xf32, #tpu.memory_space<vmem>>, %arg7: memref<1x128xf32, #tpu.memory_space<vmem>>, %arg8: memref<1x128xf32, #tpu.memory_space<vmem>>) attributes {dimension_semantics = [#tpu.dimension_semantics<parallel>, #tpu.dimension_semantics<arbitrary>], iteration_bounds = array<i64: 1, 2>, scalar_prefetch = 0 : i64, scratch_operands = 3 : i64, tpu.core_type = #tpu.core_type<tc>, window_params = [{transform_indices = @transform_0, window_bounds = array<i64: 1, 128>}, {transform_indices = @transform_1, window_bounds = array<i64: 128, 128>}, {transform_indices = @transform_2, window_bounds = array<i64: 512, 128>}, {transform_indices = @transform_3, window_bounds = array<i64: 1, 128>}]} {
    %c0_i32 = arith.constant 0 : i32
    %0 = arith.cmpi eq, %arg1, %c0_i32 : i32
    %1 = arith.extui %0 : i1 to i32
    %c0_i32_0 = arith.constant 0 : i32
    %2 = arith.cmpi ne, %1, %c0_i32_0 : i32
    scf.if %2 {
      %cst_24 = arith.constant 0xFF800000 : f32
      %43 = vector.broadcast %cst_24 : f32 to vector<1x128xf32>
      %c0_25 = arith.constant 0 : index
      %c0_26 = arith.constant 0 : index
      %44 = vector.load %arg6[%c0_25, %c0_26] : memref<1x128xf32, #tpu.memory_space<vmem>>, vector<1x128xf32>
      tpu.vector_store %arg6[%c0_25, %c0_26], %43 {strides = array<i32>} : memref<1x128xf32, #tpu.memory_space<vmem>>, vector<1x128xf32>,
      %cst_27 = arith.constant 0.000000e+00 : f32
      %45 = vector.broadcast %cst_27 : f32 to vector<1x128xf32>
      %c0_28 = arith.constant 0 : index
      %c0_29 = arith.constant 0 : index
      %46 = vector.load %arg7[%c0_28, %c0_29] : memref<1x128xf32, #tpu.memory_space<vmem>>, vector<1x128xf32>
      tpu.vector_store %arg7[%c0_28, %c0_29], %45 {strides = array<i32>} : memref<1x128xf32, #tpu.memory_space<vmem>>, vector<1x128xf32>,
      %cst_30 = arith.constant 0.000000e+00 : f32
      %47 = vector.broadcast %cst_30 : f32 to vector<1x128xf32>
      %c0_31 = arith.constant 0 : index
      %c0_32 = arith.constant 0 : index
      %48 = vector.load %arg8[%c0_31, %c0_32] : memref<1x128xf32, #tpu.memory_space<vmem>>, vector<1x128xf32>
      tpu.vector_store %arg8[%c0_31, %c0_32], %47 {strides = array<i32>} : memref<1x128xf32, #tpu.memory_space<vmem>>, vector<1x128xf32>,
    } else {
    }
    %c0 = arith.constant 0 : index
    %c0_1 = arith.constant 0 : index
    %3 = vector.load %arg4[%c0, %c0_1] : memref<512x128xbf16, #tpu.memory_space<vmem>>, vector<512x128xbf16>
    %c0_2 = arith.constant 0 : index
    %c0_3 = arith.constant 0 : index
    %4 = vector.load %arg3[%c0_2, %c0_3] : memref<128x128xbf16, #tpu.memory_space<vmem>>, vector<128x128xbf16>
    %cst = arith.constant dense<0.000000e+00> : vector<512x128xf32>
    %5 = tpu.matmul %3, %4, %cst {dimension_numbers = #tpu.dot_dimension_numbers<[1], [1], [0], [0], [0, 0, 1, 0], [], []>} : vector<512x128xbf16>, vector<128x128xbf16>, vector<512x128xf32> -> vector<512x128xf32>
    %c512_i32 = arith.constant 512 : i32
    %6 = arith.muli %arg1, %c512_i32 : i32
    %7 = tpu.iota {dimensions = array<i32: 0>} : vector<512x128xi32>
    %8 = vector.broadcast %6 : i32 to vector<512x128xi32>
    %9 = arith.addi %8, %7 : vector<512x128xi32>
    %c1000_i32 = arith.constant 1000 : i32
    %10 = vector.broadcast %c1000_i32 : i32 to vector<512x128xi32>
    %11 = arith.cmpi slt, %9, %10 : vector<512x128xi32>
    %cst_4 = arith.constant 0xFF800000 : f32
    %12 = vector.broadcast %cst_4 : f32 to vector<512x128xf32>
    %13 = arith.select %11, %5, %12 : vector<512x128xi1>, vector<512x128xf32>
    %c0_5 = arith.constant 0 : index
    %c0_6 = arith.constant 0 : index
    %14 = vector.load %arg2[%c0_5, %c0_6] : memref<1x128xi32, #tpu.memory_space<vmem>>, vector<1x128xi32>
    %15 = vector.broadcast %14 : vector<1x128xi32> to vector<512x128xi32>
    %16 = arith.cmpi eq, %9, %15 : vector<512x128xi32>
    %c0_7 = arith.constant 0 : index
    %c0_8 = arith.constant 0 : index
    %17 = vector.load %arg8[%c0_7, %c0_8] : memref<1x128xf32, #tpu.memory_space<vmem>>, vector<1x128xf32>
    %cst_9 = arith.constant 0.000000e+00 : f32
    %18 = vector.broadcast %cst_9 : f32 to vector<512x128xf32>
    %19 = arith.select %16, %13, %18 : vector<512x128xi1>, vector<512x128xf32>
    %cst_10 = arith.constant dense<0.000000e+00> : vector<128xf32>
    %20 = vector.multi_reduction <add>, %19, %cst_10 [0] : vector<512x128xf32> to vector<128xf32>
    %21 = vector.shape_cast %20 : vector<128xf32> to vector<1x128xf32>
    %22 = arith.addf %17, %21 : vector<1x128xf32>
    %c0_11 = arith.constant 0 : index
    %c0_12 = arith.constant 0 : index
    %23 = vector.load %arg8[%c0_11, %c0_12] : memref<1x128xf32, #tpu.memory_space<vmem>>, vector<1x128xf32>
    tpu.vector_store %arg8[%c0_11, %c0_12], %22 {strides = array<i32>} : memref<1x128xf32, #tpu.memory_space<vmem>>, vector<1x128xf32>,
    %c0_13 = arith.constant 0 : index
    %c0_14 = arith.constant 0 : index
    %24 = vector.load %arg6[%c0_13, %c0_14] : memref<1x128xf32, #tpu.memory_space<vmem>>, vector<1x128xf32>
    %cst_15 = arith.constant dense<0xFF800000> : vector<128xf32>
    %25 = vector.multi_reduction <maximumf>, %13, %cst_15 [0] : vector<512x128xf32> to vector<128xf32>
    %26 = vector.shape_cast %25 : vector<128xf32> to vector<1x128xf32>
    %27 = arith.maximumf %24, %26 : vector<1x128xf32>
    %28 = arith.subf %24, %27 : vector<1x128xf32>
    %29 = math.exp %28 : vector<1x128xf32>
    %c0_16 = arith.constant 0 : index
    %c0_17 = arith.constant 0 : index
    %30 = vector.load %arg7[%c0_16, %c0_17] : memref<1x128xf32, #tpu.memory_space<vmem>>, vector<1x128xf32>
    %31 = arith.mulf %29, %30 : vector<1x128xf32>
    %32 = vector.broadcast %27 : vector<1x128xf32> to vector<512x128xf32>
    %33 = arith.subf %13, %32 : vector<512x128xf32>
    %34 = math.exp %33 : vector<512x128xf32>
    %cst_18 = arith.constant dense<0.000000e+00> : vector<128xf32>
    %35 = vector.multi_reduction <add>, %34, %cst_18 [0] : vector<512x128xf32> to vector<128xf32>
    %36 = vector.shape_cast %35 : vector<128xf32> to vector<1x128xf32>
    %37 = arith.addf %31, %36 : vector<1x128xf32>
    %c0_19 = arith.constant 0 : index
    %c0_20 = arith.constant 0 : index
    %38 = vector.load %arg7[%c0_19, %c0_20] : memref<1x128xf32, #tpu.memory_space<vmem>>, vector<1x128xf32>
    tpu.vector_store %arg7[%c0_19, %c0_20], %37 {strides = array<i32>} : memref<1x128xf32, #tpu.memory_space<vmem>>, vector<1x128xf32>,
    %c0_21 = arith.constant 0 : index
    %c0_22 = arith.constant 0 : index
    %39 = vector.load %arg6[%c0_21, %c0_22] : memref<1x128xf32, #tpu.memory_space<vmem>>, vector<1x128xf32>
    tpu.vector_store %arg6[%c0_21, %c0_22], %27 {strides = array<i32>} : memref<1x128xf32, #tpu.memory_space<vmem>>, vector<1x128xf32>,
    %c1_i32 = arith.constant 1 : i32
    %40 = arith.cmpi eq, %arg1, %c1_i32 : i32
    %41 = arith.extui %40 : i1 to i32
    %c0_i32_23 = arith.constant 0 : i32
    %42 = arith.cmpi ne, %41, %c0_i32_23 : i32
    scf.if %42 {
      %c0_24 = arith.constant 0 : index
      %c0_25 = arith.constant 0 : index
      %43 = vector.load %arg6[%c0_24, %c0_25] : memref<1x128xf32, #tpu.memory_space<vmem>>, vector<1x128xf32>
      %c0_26 = arith.constant 0 : index
      %c0_27 = arith.constant 0 : index
      %44 = vector.load %arg7[%c0_26, %c0_27] : memref<1x128xf32, #tpu.memory_space<vmem>>, vector<1x128xf32>
      %45 = math.log %44 : vector<1x128xf32>
      %46 = arith.addf %43, %45 : vector<1x128xf32>
      %c-100_i32 = arith.constant -100 : i32
      %47 = vector.broadcast %c-100_i32 : i32 to vector<1x128xi32>
      %48 = arith.cmpi ne, %14, %47 : vector<1x128xi32>
      %c0_28 = arith.constant 0 : index
      %c0_29 = arith.constant 0 : index
      %49 = vector.load %arg8[%c0_28, %c0_29] : memref<1x128xf32, #tpu.memory_space<vmem>>, vector<1x128xf32>
      %50 = arith.subf %46, %49 : vector<1x128xf32>
      %cst_30 = arith.constant 0.000000e+00 : f32
      %51 = vector.broadcast %cst_30 : f32 to vector<1x128xf32>
      %52 = arith.select %48, %50, %51 : vector<1x128xi1>, vector<1x128xf32>
      %c0_31 = arith.constant 0 : index
      %c0_32 = arith.constant 0 : index
      %53 = vector.load %arg5[%c0_31, %c0_32] : memref<1x128xf32, #tpu.memory_space<vmem>>, vector<1x128xf32>
      tpu.vector_store %arg5[%c0_31, %c0_32], %52 {strides = array<i32>} : memref<1x128xf32, #tpu.memory_space<vmem>>, vector<1x128xf32>,
    } else {
    }
    return
  }
  func.func @transform_0(%arg0: i32, %arg1: i32) -> (i32, i32) {
    %c0_i32 = arith.constant 0 : i32
    %c0_i32_0 = arith.constant 0 : i32
    return %c0_i32, %arg0 : i32, i32
  }
  func.func @transform_1(%arg0: i32, %arg1: i32) -> (i32, i32) {
    %c0_i32 = arith.constant 0 : i32
    %c0_i32_0 = arith.constant 0 : i32
    return %arg0, %c0_i32 : i32, i32
  }
  func.func @transform_2(%arg0: i32, %arg1: i32) -> (i32, i32) {
    %c0_i32 = arith.constant 0 : i32
    %c0_i32_0 = arith.constant 0 : i32
    return %arg1, %c0_i32 : i32, i32
  }
  func.func @transform_3(%arg0: i32, %arg1: i32) -> (i32, i32) {
    %c0_i32 = arith.constant 0 : i32
    %c0_i32_0 = arith.constant 0 : i32
    return %c0_i32, %arg0 : i32, i32
  }
}

</mosaic_0001>

<llo_original>
// kernel: linear_cross_entropy_loss.1
$region0: #{linear_cross_entropy_loss.1}
  #allocation0 [shape = 'u32[]', space=smem, size = 0x4, offset = 0x4, fixed_abs, tag = 'smem constant byte address 0x4 - core index']
  #allocation1 [shape = 'u32[144,128]{1,0:T(1,128)}', space=vmem, size = 0x12000, scoped, tag = 'internal scratch']
  #allocation2 [shape = 'f32[1,128]{1,0:T(1,128)}', space=vmem, size = 0x200, scoped, tag = 'scratch operand']
  #allocation3 [shape = 'f32[1,128]{1,0:T(1,128)}', space=vmem, size = 0x200, scoped, tag = 'scratch operand']
  #allocation4 [shape = 'f32[1,128]{1,0:T(1,128)}', space=vmem, size = 0x200, scoped, tag = 'scratch operand']
  %s0 = inlined_call_operand.vmem [shape: s32[1,128], index: 0, kind: input, shape index: {}]
  %s1 = inlined_call_operand.vmem [shape: bf16[128,128], index: 1, kind: input, shape index: {}]
  %s2 = inlined_call_operand.vmem [shape: bf16[1000,128], index: 2, kind: input, shape index: {}]
  %s3 = inlined_call_operand.vmem [shape: f32[1,128], index: 3, kind: output, shape index: {}]
  %s4 = sld [smem:[#allocation0]]
  $region53: #{linear_cross_entropy_loss.1} parent=0
    _
  %s6 = ssub.s32 1, %s4
  %s7 = scalar_select 0, %s6, %s4
  loop: start=0, step=1, limit=4
  $region2: #{linear_cross_entropy_loss.1} parent=0 // loop_pre_header
    _
  $region3: #{linear_cross_entropy_loss.1} parent=0 // loop_header
    %s9 = sphi 0, %s13
    %p10 = scmp.ge.s32.totalorder %s9, 4
    %s16 = sphi 0, %s28
    %s17 = sphi 0, %s24
    %s18 = sphi 0, %s16
    %s19 = sphi 0, %s17
    %s20 = sphi 0, %s18
    %s21 = sphi 0, %s19
    %s31 = sphi 0, %s33
    %s34 = sphi 0, %s31
    %s35 = sphi 0, %s34
    %s51 = sphi 0, %s35
    %s57 = sphi 0, %s59
    %s60 = sphi 0, %s57
    %s61 = sphi 0, %s60
    %s77 = sphi 0, %s61
    %s83 = sphi 0, %s85
    %s86 = sphi 0, %s83
    %s87 = sphi 0, %s86
    %s103 = sphi 0, %s87
    %s109 = sphi 0, %s111
    %s112 = sphi 0, %s109
    %s113 = sphi 0, %s112
    %s129 = sphi 0, %s113
  $region4: #{linear_cross_entropy_loss.1} parent=0 // loop_header_branch
    %12 = sbr.rel (%p10) target = $region8
  $region5: #{linear_cross_entropy_loss.1} parent=0 // loop_body
    %s14 = ssub.s32 %s9, 1
    %s15 = ssub.s32 %s9, 2
    %s22 = sadd.s32 1, %s17
    %p23 = scmp.ge.s32.totalorder %s22, 2
    %s24 = scalar_select %p23, 0, %s22
    %s25 = sadd.s32 1, %s16
    %s26 = scalar_select %p23, %s25, %s16
    %p27 = scmp.ge.s32.totalorder %s26, 1
    %s28 = scalar_select %p27, 0, %s26
    %s29 = ssub.s32 %s16, %s28
    %p30 = scmp.eq.s32.totalorder %s29, 0
    %s32 = sadd.s32 %s31, 1
    %s33 = scalar_select %p30, %s31, %s32
    %p36 = pneg %p30
    %p37 = scmp.eq.s32.totalorder %s9, 1
    %p38 = por %p36, %p37
    %p39 = scmp.ne.s32.totalorder %s31, %s34
    %p40 = scmp.eq.s32.totalorder %s9, 0
    %p41 = por %p39, %p40
    %p42 = scmp.ne.s32.totalorder %s31, %s34
    %p43 = scmp.eq.s32.totalorder %s14, 1
    %p44 = por %p42, %p43
    %p45 = scmp.ne.s32.totalorder %s34, %s35
    %p46 = scmp.eq.s32.totalorder %s14, 0
    %p47 = por %p45, %p46
    %p48 = scmp.ne.s32.totalorder %s34, %s35
    %p49 = scmp.eq.s32.totalorder %s15, 1
    %p50 = por %p48, %p49
    %p52 = scmp.ne.s32.totalorder %s35, %s51
    %p53 = scmp.eq.s32.totalorder %s15, 0
    %p54 = por %p52, %p53
    %s55 = ssub.s32 %s16, %s28
    %p56 = scmp.eq.s32.totalorder %s55, 0
    %s58 = sadd.s32 %s57, 1
    %s59 = scalar_select %p56, %s57, %s58
    %p62 = pneg %p56
    %p63 = scmp.eq.s32.totalorder %s9, 1
    %p64 = por %p62, %p63
    %p65 = scmp.ne.s32.totalorder %s57, %s60
    %p66 = scmp.eq.s32.totalorder %s9, 0
    %p67 = por %p65, %p66
    %p68 = scmp.ne.s32.totalorder %s57, %s60
    %p69 = scmp.eq.s32.totalorder %s14, 1
    %p70 = por %p68, %p69
    %p71 = scmp.ne.s32.totalorder %s60, %s61
    %p72 = scmp.eq.s32.totalorder %s14, 0
    %p73 = por %p71, %p72
    %p74 = scmp.ne.s32.totalorder %s60, %s61
    %p75 = scmp.eq.s32.totalorder %s15, 1
    %p76 = por %p74, %p75
    %p78 = scmp.ne.s32.totalorder %s61, %s77
    %p79 = scmp.eq.s32.totalorder %s15, 0
    %p80 = por %p78, %p79
    %s81 = ssub.s32 %s17, %s24
    %p82 = scmp.eq.s32.totalorder %s81, 0
    %s84 = sadd.s32 %s83, 1
    %s85 = scalar_select %p82, %s83, %s84
    %p88 = pneg %p82
    %p89 = scmp.eq.s32.totalorder %s9, 1
    %p90 = por %p88, %p89
    %p91 = scmp.ne.s32.totalorder %s83, %s86
    %p92 = scmp.eq.s32.totalorder %s9, 0
    %p93 = por %p91, %p92
    %p94 = scmp.ne.s32.totalorder %s83, %s86
    %p95 = scmp.eq.s32.totalorder %s14, 1
    %p96 = por %p94, %p95
    %p97 = scmp.ne.s32.totalorder %s86, %s87
    %p98 = scmp.eq.s32.totalorder %s14, 0
    %p99 = por %p97, %p98
    %p100 = scmp.ne.s32.totalorder %s86, %s87
    %p101 = scmp.eq.s32.totalorder %s15, 1
    %p102 = por %p100, %p101
    %p104 = scmp.ne.s32.totalorder %s87, %s103
    %p105 = scmp.eq.s32.totalorder %s15, 0
    %p106 = por %p104, %p105
    %s107 = ssub.s32 %s16, %s28
    %p108 = scmp.eq.s32.totalorder %s107, 0
    %s110 = sadd.s32 %s109, 1
    %s111 = scalar_select %p108, %s109, %s110
    %p114 = pneg %p108
    %p115 = scmp.eq.s32.totalorder %s9, 1
    %p116 = por %p114, %p115
    %p117 = scmp.ne.s32.totalorder %s109, %s112
    %p118 = scmp.eq.s32.totalorder %s9, 0
    %p119 = por %p117, %p118
    %p120 = scmp.ne.s32.totalorder %s109, %s112
    %p121 = scmp.eq.s32.totalorder %s14, 1
    %p122 = por %p120, %p121
    %p123 = scmp.ne.s32.totalorder %s112, %s113
    %p124 = scmp.eq.s32.totalorder %s14, 0
    %p125 = por %p123, %p124
    %p126 = scmp.ne.s32.totalorder %s112, %s113
    %p127 = scmp.eq.s32.totalorder %s15, 1
    %p128 = por %p126, %p127
    %p130 = scmp.ne.s32.totalorder %s113, %s129
    %p131 = scmp.eq.s32.totalorder %s15, 0
    %p132 = por %p130, %p131
    %p133 = scmp.le.s32.totalorder 1, %s9
    %p134 = scmp.lt.s32.totalorder %s9, 3
    %p135 = pnand %p133, %p134
    %p136 = pneg %p135
    // Predicated region
    $region9: #{linear_cross_entropy_loss.1} parent=5 // pred_check
      _
    $region10: #{linear_cross_entropy_loss.1} parent=5 // pred_check_branch
      %138 = sbr.rel (%p135) target = $region12
    $region11: #{linear_cross_entropy_loss.1} parent=5 // pred_region
      %s139 = ssub.s32 %s9, 1
      // Predicated region
      $region13: #{linear_cross_entropy_loss.1} parent=11 // pred_check
        %p140 = pneg %p47
      $region14: #{linear_cross_entropy_loss.1} parent=11 // pred_check_branch
        %142 = sbr.rel (%p140) target = $region16
      $region15: #{linear_cross_entropy_loss.1} parent=11 // pred_region
        %p143 = scmp.lt.s32.totalorder %s18, 0
        %s144 = scalar_select %p143, %s18, 0
        %s145 = scalar_lea.vmem %s0, %s144
      $region16: #{linear_cross_entropy_loss.1} parent=11 // pred_fallthru
        _
      // Predicated region
      $region17: #{linear_cross_entropy_loss.1} parent=11 // pred_check
        %p146 = pneg %p73
      $region18: #{linear_cross_entropy_loss.1} parent=11 // pred_check_branch
        %148 = sbr.rel (%p146) target = $region20
      $region19: #{linear_cross_entropy_loss.1} parent=11 // pred_region
        %s149 = smul.u32 16, %s18
        %p150 = scmp.lt.s32.totalorder %s149, 15
        %s151 = scalar_select %p150, %s149, 15
        %s152 = smul.addr %s151, 4
        %s153 = scalar_lea.vmem %s1, %s152
        %s154 = smul.u32 16, %s18
      $region20: #{linear_cross_entropy_loss.1} parent=11 // pred_fallthru
        _
    $region12: #{linear_cross_entropy_loss.1} parent=5 // pred_fallthru
      _
    %p155 = scmp.lt.s32.totalorder %s9, 2
    // Predicated region
    $region21: #{linear_cross_entropy_loss.1} parent=5 // pred_check
      %p156 = pneg %p155
    $region22: #{linear_cross_entropy_loss.1} parent=5 // pred_check_branch
      %158 = sbr.rel (%p156) target = $region24
    $region23: #{linear_cross_entropy_loss.1} parent=5 // pred_region
      // Predicated region
      $region25: #{linear_cross_entropy_loss.1} parent=23 // pred_check
        %p159 = pneg %p93
      $region26: #{linear_cross_entropy_loss.1} parent=23 // pred_check_branch
        %161 = sbr.rel (%p159) target = $region28
      $region27: #{linear_cross_entropy_loss.1} parent=23 // pred_region
        %s162 = smul.u32 64, %s17
        %s163 = ssub.s32 125, %s162
        %p164 = scmp.lt.s32.totalorder %s163, 64
        %s165 = scalar_select %p164, %s163, 64
        %s166 = smul.u32 64, %s165
        %p167 = scmp.lt.s32.totalorder %s162, 124
        %s168 = scalar_select %p167, %s162, 124
        %s169 = smul.addr %s168, 4
        %s170 = scalar_lea.vmem %s2, %s169
        %s171 = smul.u32 64, %s17
        %s172 = ssub.s32 125, %s171
        %p173 = scmp.lt.s32.totalorder %s172, 64
        %s174 = scalar_select %p173, %s172, 64
        %s175 = smul.u32 64, %s174
      $region28: #{linear_cross_entropy_loss.1} parent=23 // pred_fallthru
        _
    $region24: #{linear_cross_entropy_loss.1} parent=5 // pred_fallthru
      _
    %p176 = scmp.le.s32.totalorder 1, %s9
    %p177 = scmp.lt.s32.totalorder %s9, 3
    %p178 = pnand %p176, %p177
    %p179 = pneg %p178
    // Predicated region
    $region29: #{linear_cross_entropy_loss.1} parent=5 // pred_check
      _
    $region30: #{linear_cross_entropy_loss.1} parent=5 // pred_check_branch
      %181 = sbr.rel (%p178) target = $region32
    $region31: #{linear_cross_entropy_loss.1} parent=5 // pred_region
      %s182 = ssub.s32 %s9, 1
      %p183 = scmp.lt.s32.totalorder %s18, 0
      %s184 = scalar_select %p183, %s18, 0
      %s185 = scalar_lea.vmem %s0, %s184
      %p186 = pneg %p47
      %p187 = pneg %p44
      %s188 = smul.u32 16, %s18
      %p189 = scmp.lt.s32.totalorder %s188, 15
      %s190 = scalar_select %p189, %s188, 15
      %s191 = smul.addr %s190, 4
      %s192 = scalar_lea.vmem %s1, %s191
      %p193 = pneg %p73
      %p194 = pneg %p70
      %s195 = smul.u32 64, %s19
      %s196 = ssub.s32 125, %s195
      %p197 = scmp.lt.s32.totalorder %s196, 64
      %s198 = scalar_select %p197, %s196, 64
      %s199 = smul.u32 64, %s198
      %p200 = scmp.lt.s32.totalorder %s195, 124
      %s201 = scalar_select %p200, %s195, 124
      %s202 = smul.addr %s201, 4
      %s203 = scalar_lea.vmem %s2, %s202
      %p204 = pneg %p99
      %p205 = pneg %p96
      %p206 = pneg %p125
      %p207 = pneg %p122
      %p208 = scmp.lt.s32.totalorder %s18, 0
      %s209 = scalar_select %p208, %s18, 0
      %s210 = scalar_lea.vmem %s3, %s209
      %p211 = scmp.lt.s32.totalorder %s18, 0
      %s212 = scalar_select %p211, %s18, 0
      %s213 = scalar_lea.vmem %s0, %s212
      %s214 = smul.u32 16, %s18
      %p215 = scmp.lt.s32.totalorder %s214, 15
      %s216 = scalar_select %p215, %s214, 15
      %s217 = smul.addr %s216, 4
      %s218 = scalar_lea.vmem %s1, %s217
      %s219 = smul.u32 16, %s18
      %s220 = smul.u32 64, %s19
      %s221 = ssub.s32 125, %s220
      %p222 = scmp.lt.s32.totalorder %s221, 64
      %s223 = scalar_select %p222, %s221, 64
      %s224 = smul.u32 64, %s223
      %p225 = scmp.lt.s32.totalorder %s220, 124
      %s226 = scalar_select %p225, %s220, 124
      %s227 = smul.addr %s226, 4
      %s228 = scalar_lea.vmem %s2, %s227
      %s229 = smul.u32 64, %s19
      %s230 = ssub.s32 125, %s229
      %p231 = scmp.lt.s32.totalorder %s230, 64
      %s232 = scalar_select %p231, %s230, 64
      %s233 = smul.u32 64, %s232
      %p234 = scmp.lt.s32.totalorder %s18, 0
      %s235 = scalar_select %p234, %s18, 0
      %s236 = scalar_lea.vmem %s3, %s235
      %p238 = scmp.eq.s32.totalorder %s19, 0
      // Predicated region
      $region33: #{linear_cross_entropy_loss.1} parent=31 // pred_check
        %p239 = pneg %p238
      $region34: #{linear_cross_entropy_loss.1} parent=31 // pred_check_branch
        %241 = sbr.rel (%p239) target = $region36
      $region35: #{linear_cross_entropy_loss.1} parent=31 // pred_region
        %242 = vst [vmem:[#allocation2] sm:$0x1] -inf
        %243 = vst [vmem:[#allocation3] sm:$0x1] 0.0
        %244 = vst [vmem:[#allocation4] sm:$0x1] 0.0
      $region36: #{linear_cross_entropy_loss.1} parent=31 // pred_fallthru
        _
      %v245 = vld [vmem:[%s228] sm:$0xf]
      %v246 = vld [vmem:[%s228 + $0x4] sm:$0xf]
      %v247 = vld [vmem:[%s228 + $0x8] sm:$0xf]
      %v248 = vld [vmem:[%s228 + $0xc] sm:$0xf]
      %v249 = vld [vmem:[%s228 + $0x10] sm:$0xf]
      %v250 = vld [vmem:[%s228 + $0x14] sm:$0xf]
      %v251 = vld [vmem:[%s228 + $0x18] sm:$0xf]
      %v252 = vld [vmem:[%s228 + $0x1c] sm:$0xf]
      %v253 = vld [vmem:[%s228 + $0x20] sm:$0xf]
      %v254 = vld [vmem:[%s228 + $0x24] sm:$0xf]
      %v255 = vld [vmem:[%s228 + $0x28] sm:$0xf]
      %v256 = vld [vmem:[%s228 + $0x2c] sm:$0xf]
      %v257 = vld [vmem:[%s228 + $0x30] sm:$0xf]
      %v258 = vld [vmem:[%s228 + $0x34] sm:$0xf]
      %v259 = vld [vmem:[%s228 + $0x38] sm:$0xf]
      %v260 = vld [vmem:[%s228 + $0x3c] sm:$0xf]
      %v261 = vld [vmem:[%s228 + $0x40] sm:$0xf]
      %v262 = vld [vmem:[%s228 + $0x44] sm:$0xf]
      %v263 = vld [vmem:[%s228 + $0x48] sm:$0xf]
      %v264 = vld [vmem:[%s228 + $0x4c] sm:$0xf]
      %v265 = vld [vmem:[%s228 + $0x50] sm:$0xf]
      %v266 = vld [vmem:[%s228 + $0x54] sm:$0xf]
      %v267 = vld [vmem:[%s228 + $0x58] sm:$0xf]
      %v268 = vld [vmem:[%s228 + $0x5c] sm:$0xf]
      %v269 = vld [vmem:[%s228 + $0x60] sm:$0xf]
      %v270 = vld [vmem:[%s228 + $0x64] sm:$0xf]
      %v271 = vld [vmem:[%s228 + $0x68] sm:$0xf]
      %v272 = vld [vmem:[%s228 + $0x6c] sm:$0xf]
      %v273 = vld [vmem:[%s228 + $0x70] sm:$0xf]
      %v274 = vld [vmem:[%s228 + $0x74] sm:$0xf]
      %v275 = vld [vmem:[%s228 + $0x78] sm:$0xf]
      %v276 = vld [vmem:[%s228 + $0x7c] sm:$0xf]
      %v277 = vld [vmem:[%s228 + $0x80] sm:$0xf]
      %v278 = vld [vmem:[%s228 + $0x84] sm:$0xf]
      %v279 = vld [vmem:[%s228 + $0x88] sm:$0xf]
      %v280 = vld [vmem:[%s228 + $0x8c] sm:$0xf]
      %v281 = vld [vmem:[%s228 + $0x90] sm:$0xf]
      %v282 = vld [vmem:[%s228 + $0x94] sm:$0xf]
      %v283 = vld [vmem:[%s228 + $0x98] sm:$0xf]
      %v284 = vld [vmem:[%s228 + $0x9c] sm:$0xf]
      %v285 = vld [vmem:[%s228 + $0xa0] sm:$0xf]
      %v286 = vld [vmem:[%s228 + $0xa4] sm:$0xf]
      %v287 = vld [vmem:[%s228 + $0xa8] sm:$0xf]
      %v288 = vld [vmem:[%s228 + $0xac] sm:$0xf]
      %v289 = vld [vmem:[%s228 + $0xb0] sm:$0xf]
      %v290 = vld [vmem:[%s228 + $0xb4] sm:$0xf]
      %v291 = vld [vmem:[%s228 + $0xb8] sm:$0xf]
      %v292 = vld [vmem:[%s228 + $0xbc] sm:$0xf]
      %v293 = vld [vmem:[%s228 + $0xc0] sm:$0xf]
      %v294 = vld [vmem:[%s228 + $0xc4] sm:$0xf]
      %v295 = vld [vmem:[%s228 + $0xc8] sm:$0xf]
      %v296 = vld [vmem:[%s228 + $0xcc] sm:$0xf]
      %v297 = vld [vmem:[%s228 + $0xd0] sm:$0xf]
      %v298 = vld [vmem:[%s228 + $0xd4] sm:$0xf]
      %v299 = vld [vmem:[%s228 + $0xd8] sm:$0xf]
      %v300 = vld [vmem:[%s228 + $0xdc] sm:$0xf]
      %v301 = vld [vmem:[%s228 + $0xe0] sm:$0xf]
      %v302 = vld [vmem:[%s228 + $0xe4] sm:$0xf]
      %v303 = vld [vmem:[%s228 + $0xe8] sm:$0xf]
      %v304 = vld [vmem:[%s228 + $0xec] sm:$0xf]
      %v305 = vld [vmem:[%s228 + $0xf0] sm:$0xf]
      %v306 = vld [vmem:[%s228 + $0xf4] sm:$0xf]
      %v307 = vld [vmem:[%s228 + $0xf8] sm:$0xf]
      %v308 = vld [vmem:[%s228 + $0xfc] sm:$0xf]
      %v309 = vld [vmem:[%s218] sm:$0xf]
      %v310 = vld [vmem:[%s218 + $0x4] sm:$0xf]
      %v311 = vld [vmem:[%s218 + $0x8] sm:$0xf]
      %v312 = vld [vmem:[%s218 + $0xc] sm:$0xf]
      %v313 = vld [vmem:[%s218 + $0x10] sm:$0xf]
      %v314 = vld [vmem:[%s218 + $0x14] sm:$0xf]
      %v315 = vld [vmem:[%s218 + $0x18] sm:$0xf]
      %v316 = vld [vmem:[%s218 + $0x1c] sm:$0xf]
      %v317 = vld [vmem:[%s218 + $0x20] sm:$0xf]
      %v318 = vld [vmem:[%s218 + $0x24] sm:$0xf]
      %v319 = vld [vmem:[%s218 + $0x28] sm:$0xf]
      %v320 = vld [vmem:[%s218 + $0x2c] sm:$0xf]
      %v321 = vld [vmem:[%s218 + $0x30] sm:$0xf]
      %v322 = vld [vmem:[%s218 + $0x34] sm:$0xf]
      %v323 = vld [vmem:[%s218 + $0x38] sm:$0xf]
      %v324 = vld [vmem:[%s218 + $0x3c] sm:$0xf]
      %v389 = vunpack.c.l.b16 %v245
      %v390 = vunpack.c.l.b16 %v246
      %v391 = vunpack.c.l.b16 %v247
      %v392 = vunpack.c.l.b16 %v248
      %v393 = vunpack.c.l.b16 %v249
      %v394 = vunpack.c.l.b16 %v250
      %v395 = vunpack.c.l.b16 %v251
      %v396 = vunpack.c.l.b16 %v252
      %v397 = vunpack.c.l.b16 %v253
      %v398 = vunpack.c.l.b16 %v254
      %v399 = vunpack.c.l.b16 %v255
      %v400 = vunpack.c.l.b16 %v256
      %v401 = vunpack.c.l.b16 %v257
      %v402 = vunpack.c.l.b16 %v258
      %v403 = vunpack.c.l.b16 %v259
      %v404 = vunpack.c.l.b16 %v260
      %v405 = vunpack.c.l.b16 %v261
      %v406 = vunpack.c.l.b16 %v262
      %v407 = vunpack.c.l.b16 %v263
      %v408 = vunpack.c.l.b16 %v264
      %v409 = vunpack.c.l.b16 %v265
      %v410 = vunpack.c.l.b16 %v266
      %v411 = vunpack.c.l.b16 %v267
      %v412 = vunpack.c.l.b16 %v268
      %v413 = vunpack.c.l.b16 %v269
      %v414 = vunpack.c.l.b16 %v270
      %v415 = vunpack.c.l.b16 %v271
      %v416 = vunpack.c.l.b16 %v272
      %v417 = vunpack.c.l.b16 %v273
      %v418 = vunpack.c.l.b16 %v274
      %v419 = vunpack.c.l.b16 %v275
      %v420 = vunpack.c.l.b16 %v276
      %v421 = vunpack.c.l.b16 %v277
      %v422 = vunpack.c.l.b16 %v278
      %v423 = vunpack.c.l.b16 %v279
      %v424 = vunpack.c.l.b16 %v280
      %v425 = vunpack.c.l.b16 %v281
      %v426 = vunpack.c.l.b16 %v282
      %v427 = vunpack.c.l.b16 %v283
      %v428 = vunpack.c.l.b16 %v284
      %v429 = vunpack.c.l.b16 %v285
      %v430 = vunpack.c.l.b16 %v286
      %v431 = vunpack.c.l.b16 %v287
      %v432 = vunpack.c.l.b16 %v288
      %v433 = vunpack.c.l.b16 %v289
      %v434 = vunpack.c.l.b16 %v290
      %v435 = vunpack.c.l.b16 %v291
      %v436 = vunpack.c.l.b16 %v292
      %v437 = vunpack.c.l.b16 %v293
      %v438 = vunpack.c.l.b16 %v294
      %v439 = vunpack.c.l.b16 %v295
      %v440 = vunpack.c.l.b16 %v296
      %v441 = vunpack.c.l.b16 %v297
      %v442 = vunpack.c.l.b16 %v298
      %v443 = vunpack.c.l.b16 %v299
      %v444 = vunpack.c.l.b16 %v300
      %v445 = vunpack.c.l.b16 %v301
      %v446 = vunpack.c.l.b16 %v302
      %v447 = vunpack.c.l.b16 %v303
      %v448 = vunpack.c.l.b16 %v304
      %v449 = vunpack.c.l.b16 %v305
      %v450 = vunpack.c.l.b16 %v306
      %v451 = vunpack.c.l.b16 %v307
      %v452 = vunpack.c.l.b16 %v308
      %v453 = vpack.c.b16 %v390, %v389
      %v454 = vpack.c.b16 %v392, %v391
      %v455 = vpack.c.b16 %v394, %v393
      %v456 = vpack.c.b16 %v396, %v395
      %v457 = vpack.c.b16 %v398, %v397
      %v458 = vpack.c.b16 %v400, %v399
      %v459 = vpack.c.b16 %v402, %v401
      %v460 = vpack.c.b16 %v404, %v403
      %v461 = vpack.c.b16 %v406, %v405
      %v462 = vpack.c.b16 %v408, %v407
      %v463 = vpack.c.b16 %v410, %v409
      %v464 = vpack.c.b16 %v412, %v411
      %v465 = vpack.c.b16 %v414, %v413
      %v466 = vpack.c.b16 %v416, %v415
      %v467 = vpack.c.b16 %v418, %v417
      %v468 = vpack.c.b16 %v420, %v419
      %v469 = vpack.c.b16 %v422, %v421
      %v470 = vpack.c.b16 %v424, %v423
      %v471 = vpack.c.b16 %v426, %v425
      %v472 = vpack.c.b16 %v428, %v427
      %v473 = vpack.c.b16 %v430, %v429
      %v474 = vpack.c.b16 %v432, %v431
      %v475 = vpack.c.b16 %v434, %v433
      %v476 = vpack.c.b16 %v436, %v435
      %v477 = vpack.c.b16 %v438, %v437
      %v478 = vpack.c.b16 %v440, %v439
      %v479 = vpack.c.b16 %v442, %v441
      %v480 = vpack.c.b16 %v444, %v443
      %v481 = vpack.c.b16 %v446, %v445
      %v482 = vpack.c.b16 %v448, %v447
      %v483 = vpack.c.b16 %v450, %v449
      %v484 = vpack.c.b16 %v452, %v451
      %v533 = vunpack.c.l.b16 %v309
      %v534 = vunpack.c.l.b16 %v310
      %v535 = vunpack.c.l.b16 %v311
      %v536 = vunpack.c.l.b16 %v312
      %v537 = vunpack.c.l.b16 %v313
      %v538 = vunpack.c.l.b16 %v314
      %v539 = vunpack.c.l.b16 %v315
      %v540 = vunpack.c.l.b16 %v316
      %v541 = vunpack.c.l.b16 %v317
      %v542 = vunpack.c.l.b16 %v318
      %v543 = vunpack.c.l.b16 %v319
      %v544 = vunpack.c.l.b16 %v320
      %v545 = vunpack.c.l.b16 %v321
      %v546 = vunpack.c.l.b16 %v322
      %v547 = vunpack.c.l.b16 %v323
      %v548 = vunpack.c.l.b16 %v324
      %v549 = vpack.c.b16 %v534, %v533
      %v550 = vpack.c.b16 %v536, %v535
      %v551 = vpack.c.b16 %v538, %v537
      %v552 = vpack.c.b16 %v540, %v539
      %v553 = vpack.c.b16 %v542, %v541
      %v554 = vpack.c.b16 %v544, %v543
      %v555 = vpack.c.b16 %v546, %v545
      %v556 = vpack.c.b16 %v548, %v547
      %565 = vmatprep.subr.bf16.mxu0 0
      %566 = vmatpush1.bf16.xpose.msra.mxu0 %v556
      %567 = vmatprep.subr.bf16.mxu0 0
      %568 = vmatpush1.bf16.xpose.msra.mxu0 %v555
      %569 = vmatprep.subr.bf16.mxu0 0
      %570 = vmatpush1.bf16.xpose.msra.mxu0 %v554
      %571 = vmatprep.subr.bf16.mxu0 0
      %572 = vmatpush1.bf16.xpose.msra.mxu0 %v553
      %573 = vmatprep.subr.bf16.mxu0 0
      %574 = vmatpush1.bf16.xpose.msra.mxu0 %v552
      %575 = vmatprep.subr.bf16.mxu0 0
      %576 = vmatpush1.bf16.xpose.msra.mxu0 %v551
      %577 = vmatprep.subr.bf16.mxu0 0
      %578 = vmatpush1.bf16.xpose.msra.mxu0 %v550
      %579 = vmatprep.subr.bf16.mxu0 0
      %580 = vmatpush1.bf16.xpose.msra.mxu0 %v549
      %581 = vmatprep.subr.bf16.mxu0 0
      %582 = vmatpush2.bf16.xpose.msra.mxu0 0
      %583 = vmatprep.subr.bf16.mxu0 0
      %584 = vmatpush2.bf16.xpose.msra.mxu0 0
      %585 = vmatprep.subr.bf16.mxu0 0
      %586 = vmatpush2.bf16.xpose.msra.mxu0 0
      %587 = vmatprep.subr.bf16.mxu0 0
      %588 = vmatpush2.bf16.xpose.msra.mxu0 0
      %589 = vmatprep.subr.bf16.mxu0 0
      %590 = vmatpush2.bf16.xpose.msra.mxu0 0
      %591 = vmatprep.subr.bf16.mxu0 0
      %592 = vmatpush2.bf16.xpose.msra.mxu0 0
      %593 = vmatprep.subr.bf16.mxu0 0
      %594 = vmatpush2.bf16.xpose.msra.mxu0 0
      %595 = vmatprep.subr.bf16.mxu0 0
      %596 = vmatpush2.bf16.xpose.msra.mxu0 0
      %597 = vmatprep.mubr.bf16.mxu0 0
      %598 = vmatmul.mubr.bf16.gmra.mxu0 %v453
      %v599 = vpop.f32.mrf.mxu0
      %v600 = vadd.f32 0.0, %v599
      %v601 = vpop.f32.mrf.mxu0
      %v602 = vpop.f32.mrf.mxu0
      %v603 = vadd.f32 0.0, %v602
      %v604 = vpop.f32.mrf.mxu0
      %605 = vmatprep.mubr.bf16.mxu0 0
      %606 = vmatmul.mubr.bf16.gmra.mxu0 %v454
      %v607 = vpop.f32.mrf.mxu0
      %v608 = vadd.f32 0.0, %v607
      %v609 = vpop.f32.mrf.mxu0
      %v610 = vpop.f32.mrf.mxu0
      %v611 = vadd.f32 0.0, %v610
      %v612 = vpop.f32.mrf.mxu0
      %613 = vmatprep.mubr.bf16.mxu0 0
      %614 = vmatmul.mubr.bf16.gmra.mxu0 %v455
      %v615 = vpop.f32.mrf.mxu0
      %v616 = vadd.f32 0.0, %v615
      %v617 = vpop.f32.mrf.mxu0
      %v618 = vpop.f32.mrf.mxu0
      %v619 = vadd.f32 0.0, %v618
      %v620 = vpop.f32.mrf.mxu0
      %621 = vmatprep.mubr.bf16.mxu0 0
      %622 = vmatmul.mubr.bf16.gmra.mxu0 %v456
      %v623 = vpop.f32.mrf.mxu0
      %v624 = vadd.f32 0.0, %v623
      %v625 = vpop.f32.mrf.mxu0
      %v626 = vpop.f32.mrf.mxu0
      %v627 = vadd.f32 0.0, %v626
      %v628 = vpop.f32.mrf.mxu0
      %629 = vmatprep.mubr.bf16.mxu0 0
      %630 = vmatmul.mubr.bf16.gmra.mxu0 %v457
      %v631 = vpop.f32.mrf.mxu0
      %v632 = vadd.f32 0.0, %v631
      %v633 = vpop.f32.mrf.mxu0
      %v634 = vpop.f32.mrf.mxu0
      %v635 = vadd.f32 0.0, %v634
      %v636 = vpop.f32.mrf.mxu0
      %637 = vmatprep.mubr.bf16.mxu0 0
      %638 = vmatmul.mubr.bf16.gmra.mxu0 %v458
      %v639 = vpop.f32.mrf.mxu0
      %v640 = vadd.f32 0.0, %v639
      %v641 = vpop.f32.mrf.mxu0
      %v642 = vpop.f32.mrf.mxu0
      %v643 = vadd.f32 0.0, %v642
      %v644 = vpop.f32.mrf.mxu0
      %645 = vmatprep.mubr.bf16.mxu0 0
      %646 = vmatmul.mubr.bf16.gmra.mxu0 %v459
      %v647 = vpop.f32.mrf.mxu0
      %v648 = vadd.f32 0.0, %v647
      %v649 = vpop.f32.mrf.mxu0
      %v650 = vpop.f32.mrf.mxu0
      %v651 = vadd.f32 0.0, %v650
      %v652 = vpop.f32.mrf.mxu0
      %653 = vmatprep.mubr.bf16.mxu0 0
      %654 = vmatmul.mubr.bf16.gmra.mxu0 %v460
      %v655 = vpop.f32.mrf.mxu0
      %v656 = vadd.f32 0.0, %v655
      %v657 = vpop.f32.mrf.mxu0
      %v658 = vpop.f32.mrf.mxu0
      %v659 = vadd.f32 0.0, %v658
      %v660 = vpop.f32.mrf.mxu0
      %661 = vmatprep.mubr.bf16.mxu0 0
      %662 = vmatmul.mubr.bf16.gmra.mxu0 %v461
      %v663 = vpop.f32.mrf.mxu0
      %v664 = vadd.f32 0.0, %v663
      %v665 = vpop.f32.mrf.mxu0
      %v666 = vpop.f32.mrf.mxu0
      %v667 = vadd.f32 0.0, %v666
      %v668 = vpop.f32.mrf.mxu0
      %669 = vmatprep.mubr.bf16.mxu0 0
      %670 = vmatmul.mubr.bf16.gmra.mxu0 %v462
      %v671 = vpop.f32.mrf.mxu0
      %v672 = vadd.f32 0.0, %v671
      %v673 = vpop.f32.mrf.mxu0
      %v674 = vpop.f32.mrf.mxu0
      %v675 = vadd.f32 0.0, %v674
      %v676 = vpop.f32.mrf.mxu0
      %677 = vmatprep.mubr.bf16.mxu0 0
      %678 = vmatmul.mubr.bf16.gmra.mxu0 %v463
      %v679 = vpop.f32.mrf.mxu0
      %v680 = vadd.f32 0.0, %v679
      %v681 = vpop.f32.mrf.mxu0
      %v682 = vpop.f32.mrf.mxu0
      %v683 = vadd.f32 0.0, %v682
      %v684 = vpop.f32.mrf.mxu0
      %685 = vmatprep.mubr.bf16.mxu0 0
      %686 = vmatmul.mubr.bf16.gmra.mxu0 %v464
      %v687 = vpop.f32.mrf.mxu0
      %v688 = vadd.f32 0.0, %v687
      %v689 = vpop.f32.mrf.mxu0
      %v690 = vpop.f32.mrf.mxu0
      %v691 = vadd.f32 0.0, %v690
      %v692 = vpop.f32.mrf.mxu0
      %693 = vmatprep.mubr.bf16.mxu0 0
      %694 = vmatmul.mubr.bf16.gmra.mxu0 %v465
      %v695 = vpop.f32.mrf.mxu0
      %v696 = vadd.f32 0.0, %v695
      %v697 = vpop.f32.mrf.mxu0
      %v698 = vpop.f32.mrf.mxu0
      %v699 = vadd.f32 0.0, %v698
      %v700 = vpop.f32.mrf.mxu0
      %701 = vmatprep.mubr.bf16.mxu0 0
      %702 = vmatmul.mubr.bf16.gmra.mxu0 %v466
      %v703 = vpop.f32.mrf.mxu0
      %v704 = vadd.f32 0.0, %v703
      %v705 = vpop.f32.mrf.mxu0
      %v706 = vpop.f32.mrf.mxu0
      %v707 = vadd.f32 0.0, %v706
      %v708 = vpop.f32.mrf.mxu0
      %709 = vmatprep.mubr.bf16.mxu0 0
      %710 = vmatmul.mubr.bf16.gmra.mxu0 %v467
      %v711 = vpop.f32.mrf.mxu0
      %v712 = vadd.f32 0.0, %v711
      %v713 = vpop.f32.mrf.mxu0
      %v714 = vpop.f32.mrf.mxu0
      %v715 = vadd.f32 0.0, %v714
      %v716 = vpop.f32.mrf.mxu0
      %717 = vmatprep.mubr.bf16.mxu0 0
      %718 = vmatmul.mubr.bf16.gmra.mxu0 %v468
      %v719 = vpop.f32.mrf.mxu0
      %v720 = vadd.f32 0.0, %v719
      %v721 = vpop.f32.mrf.mxu0
      %v722 = vpop.f32.mrf.mxu0
      %v723 = vadd.f32 0.0, %v722
      %v724 = vpop.f32.mrf.mxu0
      %725 = vmatprep.mubr.bf16.mxu0 0
      %726 = vmatmul.mubr.bf16.gmra.mxu0 %v469
      %v727 = vpop.f32.mrf.mxu0
      %v728 = vadd.f32 0.0, %v727
      %v729 = vpop.f32.mrf.mxu0
      %v730 = vpop.f32.mrf.mxu0
      %v731 = vadd.f32 0.0, %v730
      %v732 = vpop.f32.mrf.mxu0
      %733 = vmatprep.mubr.bf16.mxu0 0
      %734 = vmatmul.mubr.bf16.gmra.mxu0 %v470
      %v735 = vpop.f32.mrf.mxu0
      %v736 = vadd.f32 0.0, %v735
      %v737 = vpop.f32.mrf.mxu0
      %v738 = vpop.f32.mrf.mxu0
      %v739 = vadd.f32 0.0, %v738
      %v740 = vpop.f32.mrf.mxu0
      %741 = vmatprep.mubr.bf16.mxu0 0
      %742 = vmatmul.mubr.bf16.gmra.mxu0 %v471
      %v743 = vpop.f32.mrf.mxu0
      %v744 = vadd.f32 0.0, %v743
      %v745 = vpop.f32.mrf.mxu0
      %v746 = vpop.f32.mrf.mxu0
      %v747 = vadd.f32 0.0, %v746
      %v748 = vpop.f32.mrf.mxu0
      %749 = vmatprep.mubr.bf16.mxu0 0
      %750 = vmatmul.mubr.bf16.gmra.mxu0 %v472
      %v751 = vpop.f32.mrf.mxu0
      %v752 = vadd.f32 0.0, %v751
      %v753 = vpop.f32.mrf.mxu0
      %v754 = vpop.f32.mrf.mxu0
      %v755 = vadd.f32 0.0, %v754
      %v756 = vpop.f32.mrf.mxu0
      %757 = vmatprep.mubr.bf16.mxu0 0
      %758 = vmatmul.mubr.bf16.gmra.mxu0 %v473
      %v759 = vpop.f32.mrf.mxu0
      %v760 = vadd.f32 0.0, %v759
      %v761 = vpop.f32.mrf.mxu0
      %v762 = vpop.f32.mrf.mxu0
      %v763 = vadd.f32 0.0, %v762
      %v764 = vpop.f32.mrf.mxu0
      %765 = vmatprep.mubr.bf16.mxu0 0
      %766 = vmatmul.mubr.bf16.gmra.mxu0 %v474
      %v767 = vpop.f32.mrf.mxu0
      %v768 = vadd.f32 0.0, %v767
      %v769 = vpop.f32.mrf.mxu0
      %v770 = vpop.f32.mrf.mxu0
      %v771 = vadd.f32 0.0, %v770
      %v772 = vpop.f32.mrf.mxu0
      %773 = vmatprep.mubr.bf16.mxu0 0
      %774 = vmatmul.mubr.bf16.gmra.mxu0 %v475
      %v775 = vpop.f32.mrf.mxu0
      %v776 = vadd.f32 0.0, %v775
      %v777 = vpop.f32.mrf.mxu0
      %v778 = vpop.f32.mrf.mxu0
      %v779 = vadd.f32 0.0, %v778
      %v780 = vpop.f32.mrf.mxu0
      %781 = vmatprep.mubr.bf16.mxu0 0
      %782 = vmatmul.mubr.bf16.gmra.mxu0 %v476
      %v783 = vpop.f32.mrf.mxu0
      %v784 = vadd.f32 0.0, %v783
      %v785 = vpop.f32.mrf.mxu0
      %v786 = vpop.f32.mrf.mxu0
      %v787 = vadd.f32 0.0, %v786
      %v788 = vpop.f32.mrf.mxu0
      %789 = vmatprep.mubr.bf16.mxu0 0
      %790 = vmatmul.mubr.bf16.gmra.mxu0 %v477
      %v791 = vpop.f32.mrf.mxu0
      %v792 = vadd.f32 0.0, %v791
      %v793 = vpop.f32.mrf.mxu0
      %v794 = vpop.f32.mrf.mxu0
      %v795 = vadd.f32 0.0, %v794
      %v796 = vpop.f32.mrf.mxu0
      %797 = vmatprep.mubr.bf16.mxu0 0
      %798 = vmatmul.mubr.bf16.gmra.mxu0 %v478
      %v799 = vpop.f32.mrf.mxu0
      %v800 = vadd.f32 0.0, %v799
      %v801 = vpop.f32.mrf.mxu0
      %v802 = vpop.f32.mrf.mxu0
      %v803 = vadd.f32 0.0, %v802
      %v804 = vpop.f32.mrf.mxu0
      %805 = vmatprep.mubr.bf16.mxu0 0
      %806 = vmatmul.mubr.bf16.gmra.mxu0 %v479
      %v807 = vpop.f32.mrf.mxu0
      %v808 = vadd.f32 0.0, %v807
      %v809 = vpop.f32.mrf.mxu0
      %v810 = vpop.f32.mrf.mxu0
      %v811 = vadd.f32 0.0, %v810
      %v812 = vpop.f32.mrf.mxu0
      %813 = vmatprep.mubr.bf16.mxu0 0
      %814 = vmatmul.mubr.bf16.gmra.mxu0 %v480
      %v815 = vpop.f32.mrf.mxu0
      %v816 = vadd.f32 0.0, %v815
      %v817 = vpop.f32.mrf.mxu0
      %v818 = vpop.f32.mrf.mxu0
      %v819 = vadd.f32 0.0, %v818
      %v820 = vpop.f32.mrf.mxu0
      %821 = vmatprep.mubr.bf16.mxu0 0
      %822 = vmatmul.mubr.bf16.gmra.mxu0 %v481
      %v823 = vpop.f32.mrf.mxu0
      %v824 = vadd.f32 0.0, %v823
      %v825 = vpop.f32.mrf.mxu0
      %v826 = vpop.f32.mrf.mxu0
      %v827 = vadd.f32 0.0, %v826
      %v828 = vpop.f32.mrf.mxu0
      %829 = vmatprep.mubr.bf16.mxu0 0
      %830 = vmatmul.mubr.bf16.gmra.mxu0 %v482
      %v831 = vpop.f32.mrf.mxu0
      %v832 = vadd.f32 0.0, %v831
      %v833 = vpop.f32.mrf.mxu0
      %v834 = vpop.f32.mrf.mxu0
      %v835 = vadd.f32 0.0, %v834
      %v836 = vpop.f32.mrf.mxu0
      %837 = vmatprep.mubr.bf16.mxu0 0
      %838 = vmatmul.mubr.bf16.gmra.mxu0 %v483
      %v839 = vpop.f32.mrf.mxu0
      %v840 = vadd.f32 0.0, %v839
      %v841 = vpop.f32.mrf.mxu0
      %v842 = vpop.f32.mrf.mxu0
      %v843 = vadd.f32 0.0, %v842
      %v844 = vpop.f32.mrf.mxu0
      %845 = vmatprep.mubr.bf16.mxu0 0
      %846 = vmatmul.mubr.bf16.gmra.mxu0 %v484
      %v847 = vpop.f32.mrf.mxu0
      %v848 = vadd.f32 0.0, %v847
      %v849 = vpop.f32.mrf.mxu0
      %v850 = vpop.f32.mrf.mxu0
      %v851 = vadd.f32 0.0, %v850
      %v852 = vpop.f32.mrf.mxu0
      %853 = vdwg.mxu0
      %s854 = smul.u32 %s19, 512
      %v855 = vlaneseq
      %v856 = vshrl.u32 %v855, 7
      %v857 = vadd.s32 %v856, 8
      %v858 = vadd.s32 %v856, 16
      %v859 = vadd.s32 %v856, 24
      %v860 = vadd.s32 %v856, 32
      %v861 = vadd.s32 %v856, 40
      %v862 = vadd.s32 %v856, 48
      %v863 = vadd.s32 %v856, 56
      %v864 = vadd.s32 %v856, 64
      %v865 = vadd.s32 %v856, 72
      %v866 = vadd.s32 %v856, 80
      %v867 = vadd.s32 %v856, 88
      %v868 = vadd.s32 %v856, 96
      %v869 = vadd.s32 %v856, 104
      %v870 = vadd.s32 %v856, 112
      %v871 = vadd.s32 %v856, 120
      %v872 = vadd.s32 %v856, 128
      %v873 = vadd.s32 %v856, 136
      %v874 = vadd.s32 %v856, 144
      %v875 = vadd.s32 %v856, 152
      %v876 = vadd.s32 %v856, 160
      %v877 = vadd.s32 %v856, 168
      %v878 = vadd.s32 %v856, 176
      %v879 = vadd.s32 %v856, 184
      %v880 = vadd.s32 %v856, 192
      %v881 = vadd.s32 %v856, 200
      %v882 = vadd.s32 %v856, 208
      %v883 = vadd.s32 %v856, 216
      %v884 = vadd.s32 %v856, 224
      %v885 = vadd.s32 %v856, 232
      %v886 = vadd.s32 %v856, 240
      %v887 = vadd.s32 %v856, 248
      %v888 = vadd.s32 %v856, 256
      %v889 = vadd.s32 %v856, 264
      %v890 = vadd.s32 %v856, 272
      %v891 = vadd.s32 %v856, 280
      %v892 = vadd.s32 %v856, 288
      %v893 = vadd.s32 %v856, 296
      %v894 = vadd.s32 %v856, 304
      %v895 = vadd.s32 %v856, 312
      %v896 = vadd.s32 %v856, 320
      %v897 = vadd.s32 %v856, 328
      %v898 = vadd.s32 %v856, 336
      %v899 = vadd.s32 %v856, 344
      %v900 = vadd.s32 %v856, 352
      %v901 = vadd.s32 %v856, 360
      %v902 = vadd.s32 %v856, 368
      %v903 = vadd.s32 %v856, 376
      %v904 = vadd.s32 %v856, 384
      %v905 = vadd.s32 %v856, 392
      %v906 = vadd.s32 %v856, 400
      %v907 = vadd.s32 %v856, 408
      %v908 = vadd.s32 %v856, 416
      %v909 = vadd.s32 %v856, 424
      %v910 = vadd.s32 %v856, 432
      %v911 = vadd.s32 %v856, 440
      %v912 = vadd.s32 %v856, 448
      %v913 = vadd.s32 %v856, 456
      %v914 = vadd.s32 %v856, 464
      %v915 = vadd.s32 %v856, 472
      %v916 = vadd.s32 %v856, 480
      %v917 = vadd.s32 %v856, 488
      %v918 = vadd.s32 %v856, 496
      %v919 = vadd.s32 %v856, 504
      %v920 = vstv %s854
      %v921 = vadd.s32 %v920, %v856
      %v922 = vadd.s32 %v920, %v857
      %v923 = vadd.s32 %v920, %v858
      %v924 = vadd.s32 %v920, %v859
      %v925 = vadd.s32 %v920, %v860
      %v926 = vadd.s32 %v920, %v861
      %v927 = vadd.s32 %v920, %v862
      %v928 = vadd.s32 %v920, %v863
      %v929 = vadd.s32 %v920, %v864
      %v930 = vadd.s32 %v920, %v865
      %v931 = vadd.s32 %v920, %v866
      %v932 = vadd.s32 %v920, %v867
      %v933 = vadd.s32 %v920, %v868
      %v934 = vadd.s32 %v920, %v869
      %v935 = vadd.s32 %v920, %v870
      %v936 = vadd.s32 %v920, %v871
      %v937 = vadd.s32 %v920, %v872
      %v938 = vadd.s32 %v920, %v873
      %v939 = vadd.s32 %v920, %v874
      %v940 = vadd.s32 %v920, %v875
      %v941 = vadd.s32 %v920, %v876
      %v942 = vadd.s32 %v920, %v877
      %v943 = vadd.s32 %v920, %v878
      %v944 = vadd.s32 %v920, %v879
      %v945 = vadd.s32 %v920, %v880
      %v946 = vadd.s32 %v920, %v881
      %v947 = vadd.s32 %v920, %v882
      %v948 = vadd.s32 %v920, %v883
      %v949 = vadd.s32 %v920, %v884
      %v950 = vadd.s32 %v920, %v885
      %v951 = vadd.s32 %v920, %v886
      %v952 = vadd.s32 %v920, %v887
      %v953 = vadd.s32 %v920, %v888
      %v954 = vadd.s32 %v920, %v889
      %v955 = vadd.s32 %v920, %v890
      %v956 = vadd.s32 %v920, %v891
      %v957 = vadd.s32 %v920, %v892
      %v958 = vadd.s32 %v920, %v893
      %v959 = vadd.s32 %v920, %v894
      %v960 = vadd.s32 %v920, %v895
      %v961 = vadd.s32 %v920, %v896
      %v962 = vadd.s32 %v920, %v897
      %v963 = vadd.s32 %v920, %v898
      %v964 = vadd.s32 %v920, %v899
      %v965 = vadd.s32 %v920, %v900
      %v966 = vadd.s32 %v920, %v901
      %v967 = vadd.s32 %v920, %v902
      %v968 = vadd.s32 %v920, %v903
      %v969 = vadd.s32 %v920, %v904
      %v970 = vadd.s32 %v920, %v905
      %v971 = vadd.s32 %v920, %v906
      %v972 = vadd.s32 %v920, %v907
      %v973 = vadd.s32 %v920, %v908
      %v974 = vadd.s32 %v920, %v909
      %v975 = vadd.s32 %v920, %v910
      %v976 = vadd.s32 %v920, %v911
      %v977 = vadd.s32 %v920, %v912
      %v978 = vadd.s32 %v920, %v913
      %v979 = vadd.s32 %v920, %v914
      %v980 = vadd.s32 %v920, %v915
      %v981 = vadd.s32 %v920, %v916
      %v982 = vadd.s32 %v920, %v917
      %v983 = vadd.s32 %v920, %v918
      %v984 = vadd.s32 %v920, %v919
      %vm985 = vcmp.lt.s32.totalorder %v921, 1000
      %vm986 = vcmp.lt.s32.totalorder %v922, 1000
      %vm987 = vcmp.lt.s32.totalorder %v923, 1000
      %vm988 = vcmp.lt.s32.totalorder %v924, 1000
      %vm989 = vcmp.lt.s32.totalorder %v925, 1000
      %vm990 = vcmp.lt.s32.totalorder %v926, 1000
      %vm991 = vcmp.lt.s32.totalorder %v927, 1000
      %vm992 = vcmp.lt.s32.totalorder %v928, 1000
      %vm993 = vcmp.lt.s32.totalorder %v929, 1000
      %vm994 = vcmp.lt.s32.totalorder %v930, 1000
      %vm995 = vcmp.lt.s32.totalorder %v931, 1000
      %vm996 = vcmp.lt.s32.totalorder %v932, 1000
      %vm997 = vcmp.lt.s32.totalorder %v933, 1000
      %vm998 = vcmp.lt.s32.totalorder %v934, 1000
      %vm999 = vcmp.lt.s32.totalorder %v935, 1000
      %vm1000 = vcmp.lt.s32.totalorder %v936, 1000
      %vm1001 = vcmp.lt.s32.totalorder %v937, 1000
      %vm1002 = vcmp.lt.s32.totalorder %v938, 1000
      %vm1003 = vcmp.lt.s32.totalorder %v939, 1000
      %vm1004 = vcmp.lt.s32.totalorder %v940, 1000
      %vm1005 = vcmp.lt.s32.totalorder %v941, 1000
      %vm1006 = vcmp.lt.s32.totalorder %v942, 1000
      %vm1007 = vcmp.lt.s32.totalorder %v943, 1000
      %vm1008 = vcmp.lt.s32.totalorder %v944, 1000
      %vm1009 = vcmp.lt.s32.totalorder %v945, 1000
      %vm1010 = vcmp.lt.s32.totalorder %v946, 1000
      %vm1011 = vcmp.lt.s32.totalorder %v947, 1000
      %vm1012 = vcmp.lt.s32.totalorder %v948, 1000
      %vm1013 = vcmp.lt.s32.totalorder %v949, 1000
      %vm1014 = vcmp.lt.s32.totalorder %v950, 1000
      %vm1015 = vcmp.lt.s32.totalorder %v951, 1000
      %vm1016 = vcmp.lt.s32.totalorder %v952, 1000
      %vm1017 = vcmp.lt.s32.totalorder %v953, 1000
      %vm1018 = vcmp.lt.s32.totalorder %v954, 1000
      %vm1019 = vcmp.lt.s32.totalorder %v955, 1000
      %vm1020 = vcmp.lt.s32.totalorder %v956, 1000
      %vm1021 = vcmp.lt.s32.totalorder %v957, 1000
      %vm1022 = vcmp.lt.s32.totalorder %v958, 1000
      %vm1023 = vcmp.lt.s32.totalorder %v959, 1000
      %vm1024 = vcmp.lt.s32.totalorder %v960, 1000
      %vm1025 = vcmp.lt.s32.totalorder %v961, 1000
      %vm1026 = vcmp.lt.s32.totalorder %v962, 1000
      %vm1027 = vcmp.lt.s32.totalorder %v963, 1000
      %vm1028 = vcmp.lt.s32.totalorder %v964, 1000
      %vm1029 = vcmp.lt.s32.totalorder %v965, 1000
      %vm1030 = vcmp.lt.s32.totalorder %v966, 1000
      %vm1031 = vcmp.lt.s32.totalorder %v967, 1000
      %vm1032 = vcmp.lt.s32.totalorder %v968, 1000
      %vm1033 = vcmp.lt.s32.totalorder %v969, 1000
      %vm1034 = vcmp.lt.s32.totalorder %v970, 1000
      %vm1035 = vcmp.lt.s32.totalorder %v971, 1000
      %vm1036 = vcmp.lt.s32.totalorder %v972, 1000
      %vm1037 = vcmp.lt.s32.totalorder %v973, 1000
      %vm1038 = vcmp.lt.s32.totalorder %v974, 1000
      %vm1039 = vcmp.lt.s32.totalorder %v975, 1000
      %vm1040 = vcmp.lt.s32.totalorder %v976, 1000
      %vm1041 = vcmp.lt.s32.totalorder %v977, 1000
      %vm1042 = vcmp.lt.s32.totalorder %v978, 1000
      %vm1043 = vcmp.lt.s32.totalorder %v979, 1000
      %vm1044 = vcmp.lt.s32.totalorder %v980, 1000
      %vm1045 = vcmp.lt.s32.totalorder %v981, 1000
      %vm1046 = vcmp.lt.s32.totalorder %v982, 1000
      %vm1047 = vcmp.lt.s32.totalorder %v983, 1000
      %vm1048 = vcmp.lt.s32.totalorder %v984, 1000
      %v1049 = vsel %vm985, %v600, -inf
      %v1050 = vsel %vm986, %v603, -inf
      %v1051 = vsel %vm987, %v608, -inf
      %v1052 = vsel %vm988, %v611, -inf
      %v1053 = vsel %vm989, %v616, -inf
      %v1054 = vsel %vm990, %v619, -inf
      %v1055 = vsel %vm991, %v624, -inf
      %v1056 = vsel %vm992, %v627, -inf
      %v1057 = vsel %vm993, %v632, -inf
      %v1058 = vsel %vm994, %v635, -inf
      %v1059 = vsel %vm995, %v640, -inf
      %v1060 = vsel %vm996, %v643, -inf
      %v1061 = vsel %vm997, %v648, -inf
      %v1062 = vsel %vm998, %v651, -inf
      %v1063 = vsel %vm999, %v656, -inf
      %v1064 = vsel %vm1000, %v659, -inf
      %v1065 = vsel %vm1001, %v664, -inf
      %v1066 = vsel %vm1002, %v667, -inf
      %v1067 = vsel %vm1003, %v672, -inf
      %v1068 = vsel %vm1004, %v675, -inf
      %v1069 = vsel %vm1005, %v680, -inf
      %v1070 = vsel %vm1006, %v683, -inf
      %v1071 = vsel %vm1007, %v688, -inf
      %v1072 = vsel %vm1008, %v691, -inf
      %v1073 = vsel %vm1009, %v696, -inf
      %v1074 = vsel %vm1010, %v699, -inf
      %v1075 = vsel %vm1011, %v704, -inf
      %v1076 = vsel %vm1012, %v707, -inf
      %v1077 = vsel %vm1013, %v712, -inf
      %v1078 = vsel %vm1014, %v715, -inf
      %v1079 = vsel %vm1015, %v720, -inf
      %v1080 = vsel %vm1016, %v723, -inf
      %v1081 = vsel %vm1017, %v728, -inf
      %v1082 = vsel %vm1018, %v731, -inf
      %v1083 = vsel %vm1019, %v736, -inf
      %v1084 = vsel %vm1020, %v739, -inf
      %v1085 = vsel %vm1021, %v744, -inf
      %v1086 = vsel %vm1022, %v747, -inf
      %v1087 = vsel %vm1023, %v752, -inf
      %v1088 = vsel %vm1024, %v755, -inf
      %v1089 = vsel %vm1025, %v760, -inf
      %v1090 = vsel %vm1026, %v763, -inf
      %v1091 = vsel %vm1027, %v768, -inf
      %v1092 = vsel %vm1028, %v771, -inf
      %v1093 = vsel %vm1029, %v776, -inf
      %v1094 = vsel %vm1030, %v779, -inf
      %v1095 = vsel %vm1031, %v784, -inf
      %v1096 = vsel %vm1032, %v787, -inf
      %v1097 = vsel %vm1033, %v792, -inf
      %v1098 = vsel %vm1034, %v795, -inf
      %v1099 = vsel %vm1035, %v800, -inf
      %v1100 = vsel %vm1036, %v803, -inf
      %v1101 = vsel %vm1037, %v808, -inf
      %v1102 = vsel %vm1038, %v811, -inf
      %v1103 = vsel %vm1039, %v816, -inf
      %v1104 = vsel %vm1040, %v819, -inf
      %v1105 = vsel %vm1041, %v824, -inf
      %v1106 = vsel %vm1042, %v827, -inf
      %v1107 = vsel %vm1043, %v832, -inf
      %v1108 = vsel %vm1044, %v835, -inf
      %v1109 = vsel %vm1045, %v840, -inf
      %v1110 = vsel %vm1046, %v843, -inf
      %v1111 = vsel %vm1047, %v848, -inf
      %v1112 = vsel %vm1048, %v851, -inf
      %v1113 = vld [vmem:[%s213] sm:$0x1]
      %v1114 = vlaneseq
      %v1115 = vshrl.u32 %v1114, 7
      %v1116 = vsub.s32 0, %v1115
      %v1117 = vrot.slane %v1113, %v1116
      %vm1118 = vcmp.eq.s32.totalorder %v921, %v1117
      %vm1119 = vcmp.eq.s32.totalorder %v922, %v1117
      %vm1120 = vcmp.eq.s32.totalorder %v923, %v1117
      %vm1121 = vcmp.eq.s32.totalorder %v924, %v1117
      %vm1122 = vcmp.eq.s32.totalorder %v925, %v1117
      %vm1123 = vcmp.eq.s32.totalorder %v926, %v1117
      %vm1124 = vcmp.eq.s32.totalorder %v927, %v1117
      %vm1125 = vcmp.eq.s32.totalorder %v928, %v1117
      %vm1126 = vcmp.eq.s32.totalorder %v929, %v1117
      %vm1127 = vcmp.eq.s32.totalorder %v930, %v1117
      %vm1128 = vcmp.eq.s32.totalorder %v931, %v1117
      %vm1129 = vcmp.eq.s32.totalorder %v932, %v1117
      %vm1130 = vcmp.eq.s32.totalorder %v933, %v1117
      %vm1131 = vcmp.eq.s32.totalorder %v934, %v1117
      %vm1132 = vcmp.eq.s32.totalorder %v935, %v1117
      %vm1133 = vcmp.eq.s32.totalorder %v936, %v1117
      %vm1134 = vcmp.eq.s32.totalorder %v937, %v1117
      %vm1135 = vcmp.eq.s32.totalorder %v938, %v1117
      %vm1136 = vcmp.eq.s32.totalorder %v939, %v1117
      %vm1137 = vcmp.eq.s32.totalorder %v940, %v1117
      %vm1138 = vcmp.eq.s32.totalorder %v941, %v1117
      %vm1139 = vcmp.eq.s32.totalorder %v942, %v1117
      %vm1140 = vcmp.eq.s32.totalorder %v943, %v1117
      %vm1141 = vcmp.eq.s32.totalorder %v944, %v1117
      %vm1142 = vcmp.eq.s32.totalorder %v945, %v1117
      %vm1143 = vcmp.eq.s32.totalorder %v946, %v1117
      %vm1144 = vcmp.eq.s32.totalorder %v947, %v1117
      %vm1145 = vcmp.eq.s32.totalorder %v948, %v1117
      %vm1146 = vcmp.eq.s32.totalorder %v949, %v1117
      %vm1147 = vcmp.eq.s32.totalorder %v950, %v1117
      %vm1148 = vcmp.eq.s32.totalorder %v951, %v1117
      %vm1149 = vcmp.eq.s32.totalorder %v952, %v1117
      %vm1150 = vcmp.eq.s32.totalorder %v953, %v1117
      %vm1151 = vcmp.eq.s32.totalorder %v954, %v1117
      %vm1152 = vcmp.eq.s32.totalorder %v955, %v1117
      %vm1153 = vcmp.eq.s32.totalorder %v956, %v1117
      %vm1154 = vcmp.eq.s32.totalorder %v957, %v1117
      %vm1155 = vcmp.eq.s32.totalorder %v958, %v1117
      %vm1156 = vcmp.eq.s32.totalorder %v959, %v1117
      %vm1157 = vcmp.eq.s32.totalorder %v960, %v1117
      %vm1158 = vcmp.eq.s32.totalorder %v961, %v1117
      %vm1159 = vcmp.eq.s32.totalorder %v962, %v1117
      %vm1160 = vcmp.eq.s32.totalorder %v963, %v1117
      %vm1161 = vcmp.eq.s32.totalorder %v964, %v1117
      %vm1162 = vcmp.eq.s32.totalorder %v965, %v1117
      %vm1163 = vcmp.eq.s32.totalorder %v966, %v1117
      %vm1164 = vcmp.eq.s32.totalorder %v967, %v1117
      %vm1165 = vcmp.eq.s32.totalorder %v968, %v1117
      %vm1166 = vcmp.eq.s32.totalorder %v969, %v1117
      %vm1167 = vcmp.eq.s32.totalorder %v970, %v1117
      %vm1168 = vcmp.eq.s32.totalorder %v971, %v1117
      %vm1169 = vcmp.eq.s32.totalorder %v972, %v1117
      %vm1170 = vcmp.eq.s32.totalorder %v973, %v1117
      %vm1171 = vcmp.eq.s32.totalorder %v974, %v1117
      %vm1172 = vcmp.eq.s32.totalorder %v975, %v1117
      %vm1173 = vcmp.eq.s32.totalorder %v976, %v1117
      %vm1174 = vcmp.eq.s32.totalorder %v977, %v1117
      %vm1175 = vcmp.eq.s32.totalorder %v978, %v1117
      %vm1176 = vcmp.eq.s32.totalorder %v979, %v1117
      %vm1177 = vcmp.eq.s32.totalorder %v980, %v1117
      %vm1178 = vcmp.eq.s32.totalorder %v981, %v1117
      %vm1179 = vcmp.eq.s32.totalorder %v982, %v1117
      %vm1180 = vcmp.eq.s32.totalorder %v983, %v1117
      %vm1181 = vcmp.eq.s32.totalorder %v984, %v1117
      %v1182 = vld [vmem:[#allocation4] sm:$0x1]
      %v1183 = vsel %vm1118, %v1049, 0.0
      %v1184 = vsel %vm1119, %v1050, 0.0
      %v1185 = vsel %vm1120, %v1051, 0.0
      %v1186 = vsel %vm1121, %v1052, 0.0
      %v1187 = vsel %vm1122, %v1053, 0.0
      %v1188 = vsel %vm1123, %v1054, 0.0
      %v1189 = vsel %vm1124, %v1055, 0.0
      %v1190 = vsel %vm1125, %v1056, 0.0
      %v1191 = vsel %vm1126, %v1057, 0.0
      %v1192 = vsel %vm1127, %v1058, 0.0
      %v1193 = vsel %vm1128, %v1059, 0.0
      %v1194 = vsel %vm1129, %v1060, 0.0
      %v1195 = vsel %vm1130, %v1061, 0.0
      %v1196 = vsel %vm1131, %v1062, 0.0
      %v1197 = vsel %vm1132, %v1063, 0.0
      %v1198 = vsel %vm1133, %v1064, 0.0
      %v1199 = vsel %vm1134, %v1065, 0.0
      %v1200 = vsel %vm1135, %v1066, 0.0
      %v1201 = vsel %vm1136, %v1067, 0.0
      %v1202 = vsel %vm1137, %v1068, 0.0
      %v1203 = vsel %vm1138, %v1069, 0.0
      %v1204 = vsel %vm1139, %v1070, 0.0
      %v1205 = vsel %vm1140, %v1071, 0.0
      %v1206 = vsel %vm1141, %v1072, 0.0
      %v1207 = vsel %vm1142, %v1073, 0.0
      %v1208 = vsel %vm1143, %v1074, 0.0
      %v1209 = vsel %vm1144, %v1075, 0.0
      %v1210 = vsel %vm1145, %v1076, 0.0
      %v1211 = vsel %vm1146, %v1077, 0.0
      %v1212 = vsel %vm1147, %v1078, 0.0
      %v1213 = vsel %vm1148, %v1079, 0.0
      %v1214 = vsel %vm1149, %v1080, 0.0
      %v1215 = vsel %vm1150, %v1081, 0.0
      %v1216 = vsel %vm1151, %v1082, 0.0
      %v1217 = vsel %vm1152, %v1083, 0.0
      %v1218 = vsel %vm1153, %v1084, 0.0
      %v1219 = vsel %vm1154, %v1085, 0.0
      %v1220 = vsel %vm1155, %v1086, 0.0
      %v1221 = vsel %vm1156, %v1087, 0.0
      %v1222 = vsel %vm1157, %v1088, 0.0
      %v1223 = vsel %vm1158, %v1089, 0.0
      %v1224 = vsel %vm1159, %v1090, 0.0
      %v1225 = vsel %vm1160, %v1091, 0.0
      %v1226 = vsel %vm1161, %v1092, 0.0
      %v1227 = vsel %vm1162, %v1093, 0.0
      %v1228 = vsel %vm1163, %v1094, 0.0
      %v1229 = vsel %vm1164, %v1095, 0.0
      %v1230 = vsel %vm1165, %v1096, 0.0
      %v1231 = vsel %vm1166, %v1097, 0.0
      %v1232 = vsel %vm1167, %v1098, 0.0
      %v1233 = vsel %vm1168, %v1099, 0.0
      %v1234 = vsel %vm1169, %v1100, 0.0
      %v1235 = vsel %vm1170, %v1101, 0.0
      %v1236 = vsel %vm1171, %v1102, 0.0
      %v1237 = vsel %vm1172, %v1103, 0.0
      %v1238 = vsel %vm1173, %v1104, 0.0
      %v1239 = vsel %vm1174, %v1105, 0.0
      %v1240 = vsel %vm1175, %v1106, 0.0
      %v1241 = vsel %vm1176, %v1107, 0.0
      %v1242 = vsel %vm1177, %v1108, 0.0
      %v1243 = vsel %vm1178, %v1109, 0.0
      %v1244 = vsel %vm1179, %v1110, 0.0
      %v1245 = vsel %vm1180, %v1111, 0.0
      %v1246 = vsel %vm1181, %v1112, 0.0
      %v1247 = vadd.f32 %v1183, %v1184
      %v1248 = vadd.f32 %v1247, %v1185
      %v1249 = vadd.f32 %v1248, %v1186
      %v1250 = vadd.f32 %v1249, %v1187
      %v1251 = vadd.f32 %v1250, %v1188
      %v1252 = vadd.f32 %v1251, %v1189
      %v1253 = vadd.f32 %v1252, %v1190
      %v1254 = vadd.f32 %v1253, %v1191
      %v1255 = vadd.f32 %v1254, %v1192
      %v1256 = vadd.f32 %v1255, %v1193
      %v1257 = vadd.f32 %v1256, %v1194
      %v1258 = vadd.f32 %v1257, %v1195
      %v1259 = vadd.f32 %v1258, %v1196
      %v1260 = vadd.f32 %v1259, %v1197
      %v1261 = vadd.f32 %v1260, %v1198
      %v1262 = vadd.f32 %v1261, %v1199
      %v1263 = vadd.f32 %v1262, %v1200
      %v1264 = vadd.f32 %v1263, %v1201
      %v1265 = vadd.f32 %v1264, %v1202
      %v1266 = vadd.f32 %v1265, %v1203
      %v1267 = vadd.f32 %v1266, %v1204
      %v1268 = vadd.f32 %v1267, %v1205
      %v1269 = vadd.f32 %v1268, %v1206
      %v1270 = vadd.f32 %v1269, %v1207
      %v1271 = vadd.f32 %v1270, %v1208
      %v1272 = vadd.f32 %v1271, %v1209
      %v1273 = vadd.f32 %v1272, %v1210
      %v1274 = vadd.f32 %v1273, %v1211
      %v1275 = vadd.f32 %v1274, %v1212
      %v1276 = vadd.f32 %v1275, %v1213
      %v1277 = vadd.f32 %v1276, %v1214
      %v1278 = vadd.f32 %v1277, %v1215
      %v1279 = vadd.f32 %v1278, %v1216
      %v1280 = vadd.f32 %v1279, %v1217
      %v1281 = vadd.f32 %v1280, %v1218
      %v1282 = vadd.f32 %v1281, %v1219
      %v1283 = vadd.f32 %v1282, %v1220
      %v1284 = vadd.f32 %v1283, %v1221
      %v1285 = vadd.f32 %v1284, %v1222
      %v1286 = vadd.f32 %v1285, %v1223
      %v1287 = vadd.f32 %v1286, %v1224
      %v1288 = vadd.f32 %v1287, %v1225
      %v1289 = vadd.f32 %v1288, %v1226
      %v1290 = vadd.f32 %v1289, %v1227
      %v1291 = vadd.f32 %v1290, %v1228
      %v1292 = vadd.f32 %v1291, %v1229
      %v1293 = vadd.f32 %v1292, %v1230
      %v1294 = vadd.f32 %v1293, %v1231
      %v1295 = vadd.f32 %v1294, %v1232
      %v1296 = vadd.f32 %v1295, %v1233
      %v1297 = vadd.f32 %v1296, %v1234
      %v1298 = vadd.f32 %v1297, %v1235
      %v1299 = vadd.f32 %v1298, %v1236
      %v1300 = vadd.f32 %v1299, %v1237
      %v1301 = vadd.f32 %v1300, %v1238
      %v1302 = vadd.f32 %v1301, %v1239
      %v1303 = vadd.f32 %v1302, %v1240
      %v1304 = vadd.f32 %v1303, %v1241
      %v1305 = vadd.f32 %v1304, %v1242
      %v1306 = vadd.f32 %v1305, %v1243
      %v1307 = vadd.f32 %v1306, %v1244
      %v1308 = vadd.f32 %v1307, %v1245
      %v1309 = vadd.f32 %v1308, %v1246
      %v1310 = vrot.slane %v1309, 4
      %v1311 = vadd.f32 %v1309, %v1310
      %v1312 = vrot.slane %v1311, 2
      %v1313 = vadd.f32 %v1311, %v1312
      %v1314 = vrot.slane %v1313, 1
      %v1315 = vadd.f32 %v1313, %v1314
      %v1316 = vadd.f32 %v1182, %v1315
      %1317 = vst [vmem:[#allocation4] sm:$0x1] %v1316
      %v1318 = vld [vmem:[#allocation2] sm:$0x1]
      %v1319 = vmax.f32 %v1049, %v1053
      %v1320 = vmax.f32 %v1050, %v1054
      %v1321 = vmax.f32 %v1051, %v1055
      %v1322 = vmax.f32 %v1052, %v1056
      %v1323 = vmax.f32 %v1319, %v1057
      %v1324 = vmax.f32 %v1320, %v1058
      %v1325 = vmax.f32 %v1321, %v1059
      %v1326 = vmax.f32 %v1322, %v1060
      %v1327 = vmax.f32 %v1323, %v1061
      %v1328 = vmax.f32 %v1324, %v1062
      %v1329 = vmax.f32 %v1325, %v1063
      %v1330 = vmax.f32 %v1326, %v1064
      %v1331 = vmax.f32 %v1327, %v1065
      %v1332 = vmax.f32 %v1328, %v1066
      %v1333 = vmax.f32 %v1329, %v1067
      %v1334 = vmax.f32 %v1330, %v1068
      %v1335 = vmax.f32 %v1331, %v1069
      %v1336 = vmax.f32 %v1332, %v1070
      %v1337 = vmax.f32 %v1333, %v1071
      %v1338 = vmax.f32 %v1334, %v1072
      %v1339 = vmax.f32 %v1335, %v1073
      %v1340 = vmax.f32 %v1336, %v1074
      %v1341 = vmax.f32 %v1337, %v1075
      %v1342 = vmax.f32 %v1338, %v1076
      %v1343 = vmax.f32 %v1339, %v1077
      %v1344 = vmax.f32 %v1340, %v1078
      %v1345 = vmax.f32 %v1341, %v1079
      %v1346 = vmax.f32 %v1342, %v1080
      %v1347 = vmax.f32 %v1343, %v1081
      %v1348 = vmax.f32 %v1344, %v1082
      %v1349 = vmax.f32 %v1345, %v1083
      %v1350 = vmax.f32 %v1346, %v1084
      %v1351 = vmax.f32 %v1347, %v1085
      %v1352 = vmax.f32 %v1348, %v1086
      %v1353 = vmax.f32 %v1349, %v1087
      %v1354 = vmax.f32 %v1350, %v1088
      %v1355 = vmax.f32 %v1351, %v1089
      %v1356 = vmax.f32 %v1352, %v1090
      %v1357 = vmax.f32 %v1353, %v1091
      %v1358 = vmax.f32 %v1354, %v1092
      %v1359 = vmax.f32 %v1355, %v1093
      %v1360 = vmax.f32 %v1356, %v1094
      %v1361 = vmax.f32 %v1357, %v1095
      %v1362 = vmax.f32 %v1358, %v1096
      %v1363 = vmax.f32 %v1359, %v1097
      %v1364 = vmax.f32 %v1360, %v1098
      %v1365 = vmax.f32 %v1361, %v1099
      %v1366 = vmax.f32 %v1362, %v1100
      %v1367 = vmax.f32 %v1363, %v1101
      %v1368 = vmax.f32 %v1364, %v1102
      %v1369 = vmax.f32 %v1365, %v1103
      %v1370 = vmax.f32 %v1366, %v1104
      %v1371 = vmax.f32 %v1367, %v1105
      %v1372 = vmax.f32 %v1368, %v1106
      %v1373 = vmax.f32 %v1369, %v1107
      %v1374 = vmax.f32 %v1370, %v1108
      %v1375 = vmax.f32 %v1371, %v1109
      %v1376 = vmax.f32 %v1372, %v1110
      %v1377 = vmax.f32 %v1373, %v1111
      %v1378 = vmax.f32 %v1374, %v1112
      %v1379 = vmax.f32 %v1375, %v1376
      %v1380 = vmax.f32 %v1377, %v1378
      %v1381 = vmax.f32 %v1379, %v1380
      %v1382 = vrot.slane %v1381, 4
      %v1383 = vmax.f32 %v1381, %v1382
      %v1384 = vrot.slane %v1383, 2
      %v1385 = vmax.f32 %v1383, %v1384
      %v1386 = vrot.slane %v1385, 1
      %v1387 = vmax.f32 %v1385, %v1386
      %v1388 = vmax.f32 %v1318, %v1387
      %v1389 = vsub.f32 %v1318, %v1388
      %v1390 = vmul.f32 %v1389, 1.442695
      %v1391 = vpow.pop %v1390
      %v1392 = vld [vmem:[#allocation3] sm:$0x1]
      %v1393 = vmul.f32 %v1391, %v1392
      %v1395 = vlaneseq
      %v1396 = vshrl.u32 %v1395, 7
      %v1397 = vsub.s32 0, %v1396
      %v1398 = vrot.slane %v1388, %v1397
      %v1400 = vsub.f32 %v1049, %v1398
      %v1401 = vsub.f32 %v1050, %v1398
      %v1402 = vsub.f32 %v1051, %v1398
      %v1403 = vsub.f32 %v1052, %v1398
      %v1404 = vsub.f32 %v1053, %v1398
      %v1405 = vsub.f32 %v1054, %v1398
      %v1406 = vsub.f32 %v1055, %v1398
      %v1407 = vsub.f32 %v1056, %v1398
      %v1408 = vsub.f32 %v1057, %v1398
      %v1409 = vsub.f32 %v1058, %v1398
      %v1410 = vsub.f32 %v1059, %v1398
      %v1411 = vsub.f32 %v1060, %v1398
      %v1412 = vsub.f32 %v1061, %v1398
      %v1413 = vsub.f32 %v1062, %v1398
      %v1414 = vsub.f32 %v1063, %v1398
      %v1415 = vsub.f32 %v1064, %v1398
      %v1416 = vsub.f32 %v1065, %v1398
      %v1417 = vsub.f32 %v1066, %v1398
      %v1418 = vsub.f32 %v1067, %v1398
      %v1419 = vsub.f32 %v1068, %v1398
      %v1420 = vsub.f32 %v1069, %v1398
      %v1421 = vsub.f32 %v1070, %v1398
      %v1422 = vsub.f32 %v1071, %v1398
      %v1423 = vsub.f32 %v1072, %v1398
      %v1424 = vsub.f32 %v1073, %v1398
      %v1425 = vsub.f32 %v1074, %v1398
      %v1426 = vsub.f32 %v1075, %v1398
      %v1427 = vsub.f32 %v1076, %v1398
      %v1428 = vsub.f32 %v1077, %v1398
      %v1429 = vsub.f32 %v1078, %v1398
      %v1430 = vsub.f32 %v1079, %v1398
      %v1431 = vsub.f32 %v1080, %v1398
      %v1432 = vsub.f32 %v1081, %v1398
      %v1433 = vsub.f32 %v1082, %v1398
      %v1434 = vsub.f32 %v1083, %v1398
      %v1435 = vsub.f32 %v1084, %v1398
      %v1436 = vsub.f32 %v1085, %v1398
      %v1437 = vsub.f32 %v1086, %v1398
      %v1438 = vsub.f32 %v1087, %v1398
      %v1439 = vsub.f32 %v1088, %v1398
      %v1440 = vsub.f32 %v1089, %v1398
      %v1441 = vsub.f32 %v1090, %v1398
      %v1442 = vsub.f32 %v1091, %v1398
      %v1443 = vsub.f32 %v1092, %v1398
      %v1444 = vsub.f32 %v1093, %v1398
      %v1445 = vsub.f32 %v1094, %v1398
      %v1446 = vsub.f32 %v1095, %v1398
      %v1447 = vsub.f32 %v1096, %v1398
      %v1448 = vsub.f32 %v1097, %v1398
      %v1449 = vsub.f32 %v1098, %v1398
      %v1450 = vsub.f32 %v1099, %v1398
      %v1451 = vsub.f32 %v1100, %v1398
      %v1452 = vsub.f32 %v1101, %v1398
      %v1453 = vsub.f32 %v1102, %v1398
      %v1454 = vsub.f32 %v1103, %v1398
      %v1455 = vsub.f32 %v1104, %v1398
      %v1456 = vsub.f32 %v1105, %v1398
      %v1457 = vsub.f32 %v1106, %v1398
      %v1458 = vsub.f32 %v1107, %v1398
      %v1459 = vsub.f32 %v1108, %v1398
      %v1460 = vsub.f32 %v1109, %v1398
      %v1461 = vsub.f32 %v1110, %v1398
      %v1462 = vsub.f32 %v1111, %v1398
      %v1463 = vsub.f32 %v1112, %v1398
      %v1464 = vmul.f32 %v1400, 1.442695
      %v1465 = vpow.pop %v1464
      %v1466 = vmul.f32 %v1401, 1.442695
      %v1467 = vpow.pop %v1466
      %v1468 = vmul.f32 %v1402, 1.442695
      %v1469 = vpow.pop %v1468
      %v1470 = vmul.f32 %v1403, 1.442695
      %v1471 = vpow.pop %v1470
      %v1472 = vmul.f32 %v1404, 1.442695
      %v1473 = vpow.pop %v1472
      %v1474 = vmul.f32 %v1405, 1.442695
      %v1475 = vpow.pop %v1474
      %v1476 = vmul.f32 %v1406, 1.442695
      %v1477 = vpow.pop %v1476
      %v1478 = vmul.f32 %v1407, 1.442695
      %v1479 = vpow.pop %v1478
      %v1480 = vmul.f32 %v1408, 1.442695
      %v1481 = vpow.pop %v1480
      %v1482 = vmul.f32 %v1409, 1.442695
      %v1483 = vpow.pop %v1482
      %v1484 = vmul.f32 %v1410, 1.442695
      %v1485 = vpow.pop %v1484
      %v1486 = vmul.f32 %v1411, 1.442695
      %v1487 = vpow.pop %v1486
      %v1488 = vmul.f32 %v1412, 1.442695
      %v1489 = vpow.pop %v1488
      %v1490 = vmul.f32 %v1413, 1.442695
      %v1491 = vpow.pop %v1490
      %v1492 = vmul.f32 %v1414, 1.442695
      %v1493 = vpow.pop %v1492
      %v1494 = vmul.f32 %v1415, 1.442695
      %v1495 = vpow.pop %v1494
      %v1496 = vmul.f32 %v1416, 1.442695
      %v1497 = vpow.pop %v1496
      %v1498 = vmul.f32 %v1417, 1.442695
      %v1499 = vpow.pop %v1498
      %v1500 = vmul.f32 %v1418, 1.442695
      %v1501 = vpow.pop %v1500
      %v1502 = vmul.f32 %v1419, 1.442695
      %v1503 = vpow.pop %v1502
      %v1504 = vmul.f32 %v1420, 1.442695
      %v1505 = vpow.pop %v1504
      %v1506 = vmul.f32 %v1421, 1.442695
      %v1507 = vpow.pop %v1506
      %v1508 = vmul.f32 %v1422, 1.442695
      %v1509 = vpow.pop %v1508
      %v1510 = vmul.f32 %v1423, 1.442695
      %v1511 = vpow.pop %v1510
      %v1512 = vmul.f32 %v1424, 1.442695
      %v1513 = vpow.pop %v1512
      %v1514 = vmul.f32 %v1425, 1.442695
      %v1515 = vpow.pop %v1514
      %v1516 = vmul.f32 %v1426, 1.442695
      %v1517 = vpow.pop %v1516
      %v1518 = vmul.f32 %v1427, 1.442695
      %v1519 = vpow.pop %v1518
      %v1520 = vmul.f32 %v1428, 1.442695
      %v1521 = vpow.pop %v1520
      %v1522 = vmul.f32 %v1429, 1.442695
      %v1523 = vpow.pop %v1522
      %v1524 = vmul.f32 %v1430, 1.442695
      %v1525 = vpow.pop %v1524
      %v1526 = vmul.f32 %v1431, 1.442695
      %v1527 = vpow.pop %v1526
      %v1528 = vmul.f32 %v1432, 1.442695
      %v1529 = vpow.pop %v1528
      %v1530 = vmul.f32 %v1433, 1.442695
      %v1531 = vpow.pop %v1530
      %v1532 = vmul.f32 %v1434, 1.442695
      %v1533 = vpow.pop %v1532
      %v1534 = vmul.f32 %v1435, 1.442695
      %v1535 = vpow.pop %v1534
      %v1536 = vmul.f32 %v1436, 1.442695
      %v1537 = vpow.pop %v1536
      %v1538 = vmul.f32 %v1437, 1.442695
      %v1539 = vpow.pop %v1538
      %v1540 = vmul.f32 %v1438, 1.442695
      %v1541 = vpow.pop %v1540
      %v1542 = vmul.f32 %v1439, 1.442695
      %v1543 = vpow.pop %v1542
      %v1544 = vmul.f32 %v1440, 1.442695
      %v1545 = vpow.pop %v1544
      %v1546 = vmul.f32 %v1441, 1.442695
      %v1547 = vpow.pop %v1546
      %v1548 = vmul.f32 %v1442, 1.442695
      %v1549 = vpow.pop %v1548
      %v1550 = vmul.f32 %v1443, 1.442695
      %v1551 = vpow.pop %v1550
      %v1552 = vmul.f32 %v1444, 1.442695
      %v1553 = vpow.pop %v1552
      %v1554 = vmul.f32 %v1445, 1.442695
      %v1555 = vpow.pop %v1554
      %v1556 = vmul.f32 %v1446, 1.442695
      %v1557 = vpow.pop %v1556
      %v1558 = vmul.f32 %v1447, 1.442695
      %v1559 = vpow.pop %v1558
      %v1560 = vmul.f32 %v1448, 1.442695
      %v1561 = vpow.pop %v1560
      %v1562 = vmul.f32 %v1449, 1.442695
      %v1563 = vpow.pop %v1562
      %v1564 = vmul.f32 %v1450, 1.442695
      %v1565 = vpow.pop %v1564
      %v1566 = vmul.f32 %v1451, 1.442695
      %v1567 = vpow.pop %v1566
      %v1568 = vmul.f32 %v1452, 1.442695
      %v1569 = vpow.pop %v1568
      %v1570 = vmul.f32 %v1453, 1.442695
      %v1571 = vpow.pop %v1570
      %v1572 = vmul.f32 %v1454, 1.442695
      %v1573 = vpow.pop %v1572
      %v1574 = vmul.f32 %v1455, 1.442695
      %v1575 = vpow.pop %v1574
      %v1576 = vmul.f32 %v1456, 1.442695
      %v1577 = vpow.pop %v1576
      %v1578 = vmul.f32 %v1457, 1.442695
      %v1579 = vpow.pop %v1578
      %v1580 = vmul.f32 %v1458, 1.442695
      %v1581 = vpow.pop %v1580
      %v1582 = vmul.f32 %v1459, 1.442695
      %v1583 = vpow.pop %v1582
      %v1584 = vmul.f32 %v1460, 1.442695
      %v1585 = vpow.pop %v1584
      %v1586 = vmul.f32 %v1461, 1.442695
      %v1587 = vpow.pop %v1586
      %v1588 = vmul.f32 %v1462, 1.442695
      %v1589 = vpow.pop %v1588
      %v1590 = vmul.f32 %v1463, 1.442695
      %v1591 = vpow.pop %v1590
      %v1592 = vadd.f32 %v1465, %v1467
      %v1593 = vadd.f32 %v1592, %v1469
      %v1594 = vadd.f32 %v1593, %v1471
      %v1595 = vadd.f32 %v1594, %v1473
      %v1596 = vadd.f32 %v1595, %v1475
      %v1597 = vadd.f32 %v1596, %v1477
      %v1598 = vadd.f32 %v1597, %v1479
      %v1599 = vadd.f32 %v1598, %v1481
      %v1600 = vadd.f32 %v1599, %v1483
      %v1601 = vadd.f32 %v1600, %v1485
      %v1602 = vadd.f32 %v1601, %v1487
      %v1603 = vadd.f32 %v1602, %v1489
      %v1604 = vadd.f32 %v1603, %v1491
      %v1605 = vadd.f32 %v1604, %v1493
      %v1606 = vadd.f32 %v1605, %v1495
      %v1607 = vadd.f32 %v1606, %v1497
      %v1608 = vadd.f32 %v1607, %v1499
      %v1609 = vadd.f32 %v1608, %v1501
      %v1610 = vadd.f32 %v1609, %v1503
      %v1611 = vadd.f32 %v1610, %v1505
      %v1612 = vadd.f32 %v1611, %v1507
      %v1613 = vadd.f32 %v1612, %v1509
      %v1614 = vadd.f32 %v1613, %v1511
      %v1615 = vadd.f32 %v1614, %v1513
      %v1616 = vadd.f32 %v1615, %v1515
      %v1617 = vadd.f32 %v1616, %v1517
      %v1618 = vadd.f32 %v1617, %v1519
      %v1619 = vadd.f32 %v1618, %v1521
      %v1620 = vadd.f32 %v1619, %v1523
      %v1621 = vadd.f32 %v1620, %v1525
      %v1622 = vadd.f32 %v1621, %v1527
      %v1623 = vadd.f32 %v1622, %v1529
      %v1624 = vadd.f32 %v1623, %v1531
      %v1625 = vadd.f32 %v1624, %v1533
      %v1626 = vadd.f32 %v1625, %v1535
      %v1627 = vadd.f32 %v1626, %v1537
      %v1628 = vadd.f32 %v1627, %v1539
      %v1629 = vadd.f32 %v1628, %v1541
      %v1630 = vadd.f32 %v1629, %v1543
      %v1631 = vadd.f32 %v1630, %v1545
      %v1632 = vadd.f32 %v1631, %v1547
      %v1633 = vadd.f32 %v1632, %v1549
      %v1634 = vadd.f32 %v1633, %v1551
      %v1635 = vadd.f32 %v1634, %v1553
      %v1636 = vadd.f32 %v1635, %v1555
      %v1637 = vadd.f32 %v1636, %v1557
      %v1638 = vadd.f32 %v1637, %v1559
      %v1639 = vadd.f32 %v1638, %v1561
      %v1640 = vadd.f32 %v1639, %v1563
      %v1641 = vadd.f32 %v1640, %v1565
      %v1642 = vadd.f32 %v1641, %v1567
      %v1643 = vadd.f32 %v1642, %v1569
      %v1644 = vadd.f32 %v1643, %v1571
      %v1645 = vadd.f32 %v1644, %v1573
      %v1646 = vadd.f32 %v1645, %v1575
      %v1647 = vadd.f32 %v1646, %v1577
      %v1648 = vadd.f32 %v1647, %v1579
      %v1649 = vadd.f32 %v1648, %v1581
      %v1650 = vadd.f32 %v1649, %v1583
      %v1651 = vadd.f32 %v1650, %v1585
      %v1652 = vadd.f32 %v1651, %v1587
      %v1653 = vadd.f32 %v1652, %v1589
      %v1654 = vadd.f32 %v1653, %v1591
      %v1655 = vrot.slane %v1654, 4
      %v1656 = vadd.f32 %v1654, %v1655
      %v1657 = vrot.slane %v1656, 2
      %v1658 = vadd.f32 %v1656, %v1657
      %v1659 = vrot.slane %v1658, 1
      %v1660 = vadd.f32 %v1658, %v1659
      %v1661 = vadd.f32 %v1393, %v1660
      %1662 = vst [vmem:[#allocation3] sm:$0x1] %v1661
      %1663 = vst [vmem:[#allocation2] sm:$0x1] %v1388
      %p1664 = scmp.eq.s32.totalorder %s19, 1
      // Predicated region
      $region37: #{linear_cross_entropy_loss.1} parent=31 // pred_check
        %p1665 = pneg %p1664
      $region38: #{linear_cross_entropy_loss.1} parent=31 // pred_check_branch
        %1667 = sbr.rel (%p1665) target = $region40
      $region39: #{linear_cross_entropy_loss.1} parent=31 // pred_region
        %v1668 = vld [vmem:[#allocation2] sm:$0x1]
        %v1669 = vld [vmem:[#allocation3] sm:$0x1]
        %v1670 = vlog2.pop %v1669
        %v1671 = vmul.f32 %v1670, 0.6931472
        %v1672 = vadd.f32 %v1668, %v1671
        %vm1673 = vcmp.ne.s32.totalorder %v1113, 4294967196
        %v1674 = vld [vmem:[#allocation4] sm:$0x1]
        %v1675 = vsub.f32 %v1672, %v1674
        %v1676 = vsel %vm1673, %v1675, 0.0
        %1677 = vst [vmem:[%s236] sm:$0x1] %v1676
      $region40: #{linear_cross_entropy_loss.1} parent=31 // pred_fallthru
        _
      %p1678 = scmp.lt.s32.totalorder %s18, 0
      %s1679 = scalar_select %p1678, %s18, 0
      %s1680 = scalar_lea.vmem %s3, %s1679
      // Predicated region
      $region41: #{linear_cross_entropy_loss.1} parent=31 // pred_check
        %p1681 = pneg %p122
      $region42: #{linear_cross_entropy_loss.1} parent=31 // pred_check_branch
        %1683 = sbr.rel (%p1681) target = $region44
      $region43: #{linear_cross_entropy_loss.1} parent=31 // pred_region
        _
      $region44: #{linear_cross_entropy_loss.1} parent=31 // pred_fallthru
        _
      // Predicated region
      $region45: #{linear_cross_entropy_loss.1} parent=31 // pred_check
        %p1684 = pneg %p122
      $region46: #{linear_cross_entropy_loss.1} parent=31 // pred_check_branch
        %1686 = sbr.rel (%p1684) target = $region48
      $region47: #{linear_cross_entropy_loss.1} parent=31 // pred_region
        %p1687 = scmp.lt.s32.totalorder %s18, 0
        %s1688 = scalar_select %p1687, %s18, 0
        %s1689 = scalar_lea.vmem %s3, %s1688
      $region48: #{linear_cross_entropy_loss.1} parent=31 // pred_fallthru
        _
    $region32: #{linear_cross_entropy_loss.1} parent=5 // pred_fallthru
      _
    %p1690 = scmp.le.s32.totalorder 2, %s9
    // Predicated region
    $region49: #{linear_cross_entropy_loss.1} parent=5 // pred_check
      %p1691 = pneg %p1690
    $region50: #{linear_cross_entropy_loss.1} parent=5 // pred_check_branch
      %1693 = sbr.rel (%p1691) target = $region52
    $region51: #{linear_cross_entropy_loss.1} parent=5 // pred_region
      %s1694 = ssub.s32 %s9, 2
    $region52: #{linear_cross_entropy_loss.1} parent=5 // pred_fallthru
      _
  $region6: #{linear_cross_entropy_loss.1} parent=0 // loop_footer
    %s13 = sadd.s32 1, %s9
  $region7: #{linear_cross_entropy_loss.1} parent=0 // loop_footer_branch
    %8 = sbr.rel target = $region3
  $region8: #{linear_cross_entropy_loss.1} parent=0 // loop_exit
    _

</llo_original>
